<compile_context>
chip_gen: v7x
topology: tpu7x:2x2x1
jax: 0.10.0
libtpu: 0.0.40
codegen_flags: <defaults>
</compile_context>

<pallas_src>
import jax
import jax.numpy as jnp
import numpy as np
from jax import lax
from jax.experimental import pallas as pl
from jax.experimental.pallas import tpu as pltpu


# ----------------------------- Pallas kernel -------------------------------


def _make_fused_kernel(num_layers, T, B, H):
    """Fused kernel: num_layers LSTM layers over T steps + Linear head.

    Ref layout (positional):
      x_ref                         : (T*B, I)  f32, time-major flattened
      wih0_ref                      : (I, 4H)   bf16  (layer-0 input weights)
      b_refs[0..L-1]                : (1, 4H)   f32   (b_ih + b_hh per layer)
      wcomb_refs[0..L-2]            : (H, 8H)   bf16  ([W_hh_l | W_ih_{l+1}])
      whh_last_ref                  : (H, 4H)   bf16  (last layer W_hh)
      w_fc_ref, b_fc_ref            : (H, O) bf16, (1, O) f32
      out_ref                       : (B, O)    f32
    """

    def kernel(*refs):
        idx = 0
        x_ref = refs[idx]; idx += 1
        wih0_ref = refs[idx]; idx += 1
        b_refs = refs[idx:idx + num_layers]; idx += num_layers
        wcomb_refs = refs[idx:idx + num_layers - 1]; idx += num_layers - 1
        whh_last_ref = refs[idx]; idx += 1
        w_fc_ref = refs[idx]; idx += 1
        b_fc_ref = refs[idx]; idx += 1
        out_ref = refs[idx]

        # Hoisted layer-0 input projection + bias for ALL time steps: 1 matmul.
        gx0 = (
            jnp.dot(x_ref[...].astype(jnp.bfloat16), wih0_ref[...],
                    preferred_element_type=jnp.float32)
            + b_refs[0][...]
        )                                                      # (T*B, 4H) f32
        # Per-step pre-activations of the layer currently being processed.
        gx_steps = [gx0[t * B:(t + 1) * B, :] for t in range(T)]

        h = None
        for l in range(num_layers):
            last = (l == num_layers - 1)
            w = whh_last_ref[...] if last else wcomb_refs[l][...]   # bf16

            h = jnp.zeros((B, H), jnp.float32)
            c = jnp.zeros((B, H), jnp.float32)
            recur = jnp.zeros((B, 4 * H), jnp.float32)  # h_{-1} @ W_hh == 0
            next_gx = []

            # Statically unrolled recurrence (T is compile-time constant).
            for t in range(T):
                gates = gx_steps[t] + recur                     # (B, 4H) f32

                # One full-vreg sigmoid (i, f, o lanes); tanh only on g.
                sig = jax.nn.sigmoid(gates)
                i_g = sig[:, 0 * H:1 * H]
                f_g = sig[:, 1 * H:2 * H]
                o_g = sig[:, 3 * H:4 * H]
                g_g = jnp.tanh(gates[:, 2 * H:3 * H])

                c = f_g * c + i_g * g_g
                h = o_g * jnp.tanh(c)

                if not last:
                    # Single fused push: recurrence for step t+1 AND the next
                    # layer's input projection for step t.  (B, 8H) out.
                    wide = jnp.dot(h.astype(jnp.bfloat16), w,
                                   preferred_element_type=jnp.float32)
                    recur = wide[:, :4 * H]
                    next_gx.append(wide[:, 4 * H:] + b_refs[l + 1][...])
                elif t + 1 < T:
                    recur = jnp.dot(h.astype(jnp.bfloat16), w,
                                    preferred_element_type=jnp.float32)

            gx_steps = next_gx

        # FC head on the final hidden state of the last layer.
        # NOTE: (B, O) = (2, 8) -> lane-masked store; negligible at this size.
        out_ref[...] = (
            jnp.dot(h.astype(jnp.bfloat16), w_fc_ref[...],
                    preferred_element_type=jnp.float32)
            + b_fc_ref[...]
        )

    return kernel


# ------------------------------ host wrapper --------------------------------


def build_forward(input_size, hidden_size, output_size, num_layers, batch, seq_len):
    T, B, I, H, O = seq_len, batch, input_size, hidden_size, output_size
    kernel = _make_fused_kernel(num_layers, T, B, H)

    in_specs = [
        pl.BlockSpec((T * B, I), lambda: (0, 0)),         # x
        pl.BlockSpec((I, 4 * H), lambda: (0, 0)),         # W_ih layer 0
    ]
    in_specs += [pl.BlockSpec((1, 4 * H), lambda: (0, 0))
                 for _ in range(num_layers)]              # biases
    in_specs += [pl.BlockSpec((H, 8 * H), lambda: (0, 0))
                 for _ in range(num_layers - 1)]          # [W_hh_l | W_ih_{l+1}]
    in_specs += [
        pl.BlockSpec((H, 4 * H), lambda: (0, 0)),         # W_hh last layer
        pl.BlockSpec((H, O), lambda: (0, 0)),             # W_fc
        pl.BlockSpec((1, O), lambda: (0, 0)),             # b_fc
    ]

    fused = pl.pallas_call(
        kernel,
        out_shape=jax.ShapeDtypeStruct((B, O), jnp.float32),
        in_specs=in_specs,
        out_specs=pl.BlockSpec((B, O), lambda: (0, 0)),
    )

    @jax.jit
    def forward(x, prepared):
        """x: (B, T, input_size) batch-first, as in the PyTorch module."""
        x_tm = jnp.transpose(x, (1, 0, 2)).reshape(T * B, I).astype(jnp.float32)
        args = [x_tm, prepared["wih0"], *prepared["biases"],
                *prepared["wcombs"], prepared["whh_last"],
                prepared["w_fc"], prepared["b_fc"]]
        return fused(*args)

    return forward


def init_params(key, input_size, hidden_size, output_size, num_layers):
    """PyTorch-style init: U(-1/sqrt(H), 1/sqrt(H)) for all LSTM/Linear params."""
    params = {"lstm": [], "fc": None}
    bound = 1.0 / np.sqrt(hidden_size)
    for layer in range(num_layers):
        in_sz = input_size if layer == 0 else hidden_size
        key, k1, k2, k3, k4 = jax.random.split(key, 5)
        w_ih = jax.random.uniform(k1, (4 * hidden_size, in_sz), jnp.float32, -bound, bound)
        w_hh = jax.random.uniform(k2, (4 * hidden_size, hidden_size), jnp.float32, -bound, bound)
        b_ih = jax.random.uniform(k3, (4 * hidden_size,), jnp.float32, -bound, bound)
        b_hh = jax.random.uniform(k4, (4 * hidden_size,), jnp.float32, -bound, bound)
        params["lstm"].append((w_ih, w_hh, b_ih, b_hh))
    key, k1, k2 = jax.random.split(key, 3)
    w_fc = jax.random.uniform(k1, (output_size, hidden_size), jnp.float32, -bound, bound)
    b_fc = jax.random.uniform(k2, (output_size,), jnp.float32, -bound, bound)
    params["fc"] = (w_fc, b_fc)
    return params


def prepare_params(params):
    """One-time (outside jit) re-layout: transpose, combine, bf16-cast weights."""
    lstm = params["lstm"]
    L = len(lstm)
    wih0 = lstm[0][0].T.astype(jnp.bfloat16)                      # (I, 4H)
    biases = [((b_ih + b_hh)[None, :]).astype(jnp.float32)
              for (_, _, b_ih, b_hh) in lstm]                     # (1, 4H) each
    wcombs = []
    for l in range(L - 1):
        w_hh_l = lstm[l][1].T                                     # (H, 4H)
        w_ih_next = lstm[l + 1][0].T                              # (H, 4H)
        wcombs.append(jnp.concatenate([w_hh_l, w_ih_next], axis=1)
                      .astype(jnp.bfloat16))                      # (H, 8H)
    whh_last = lstm[-1][1].T.astype(jnp.bfloat16)                 # (H, 4H)
    w_fc, b_fc = params["fc"]
    return {
        "wih0": wih0,
        "biases": biases,
        "wcombs": wcombs,
        "whh_last": whh_last,
        "w_fc": w_fc.T.astype(jnp.bfloat16),                      # (H, O)
        "b_fc": b_fc[None, :].astype(jnp.float32),                # (1, O)
    }


def reference_forward(x, params):
    """Pure-JAX f32 reference (mirrors torch.nn.LSTM + Linear) for verification."""
    lstm_params, (w_fc, b_fc) = params
    B = x.shape[0]
    seq = jnp.transpose(x, (1, 0, 2))  # (T, B, I)
    for (w_ih, w_hh, b_ih, b_hh) in lstm_params:
        H = w_hh.shape[1]
        h0 = jnp.zeros((B, H), jnp.float32)
        c0 = jnp.zeros((B, H), jnp.float32)

        def step(carry, x_t):
            h, c = carry
            g = x_t @ w_ih.T + h @ w_hh.T + b_ih + b_hh
            i = jax.nn.sigmoid(g[:, 0 * H:1 * H])
            f = jax.nn.sigmoid(g[:, 1 * H:2 * H])
            gg = jnp.tanh(g[:, 2 * H:3 * H])
            o = jax.nn.sigmoid(g[:, 3 * H:4 * H])
            c = f * c + i * gg
            h = o * jnp.tanh(c)
            return (h, c), h

        (_, _), seq = lax.scan(step, (h0, c0), seq)
    return seq[-1] @ w_fc.T + b_fc


if __name__ == "__main__":
    input_size, hidden_size, output_size, num_layers = 16, 32, 8, 2
    batch, seq_len = 2, 8

    key = jax.random.PRNGKey(0)
    kp, kx = jax.random.split(key)
    params = init_params(kp, input_size, hidden_size, output_size, num_layers)
    prepared = prepare_params(params)

    x = jax.random.normal(kx, (batch, seq_len, input_size), jnp.float32)

    forward = build_forward(input_size, hidden_size, output_size, num_layers,
                            batch, seq_len)
    out = jax.block_until_ready(forward(x, prepared))

    ref = reference_forward(x, (params["lstm"], params["fc"]))
    # bf16 MXU operands -> relaxed parity tolerance vs. the f32 reference.
    np.testing.assert_allclose(np.asarray(out), np.asarray(ref), rtol=2e-2, atol=2e-2)
    assert out.shape == (batch, output_size)

    print("KERNEL_OK")
</pallas_src>

<mosaic_0001>
module attributes {stable_mosaic.version = 11 : i64} {
  func.func @kernel(%arg0: memref<16x16xf32, #tpu.memory_space<vmem>>, %arg1: memref<16x128xbf16, #tpu.memory_space<vmem>>, %arg2: memref<1x128xf32, #tpu.memory_space<vmem>>, %arg3: memref<1x128xf32, #tpu.memory_space<vmem>>, %arg4: memref<32x256xbf16, #tpu.memory_space<vmem>>, %arg5: memref<32x128xbf16, #tpu.memory_space<vmem>>, %arg6: memref<32x8xbf16, #tpu.memory_space<vmem>>, %arg7: memref<1x8xf32, #tpu.memory_space<vmem>>, %arg8: memref<2x8xf32, #tpu.memory_space<vmem>>) attributes {dimension_semantics = [], scalar_prefetch = 0 : i64, scratch_operands = 0 : i64, tpu.core_type = #tpu.core_type<tc>} {
    %c0 = arith.constant 0 : index
    %c0_0 = arith.constant 0 : index
    %0 = vector.load %arg0[%c0, %c0_0] : memref<16x16xf32, #tpu.memory_space<vmem>>, vector<16x16xf32>
    %1 = arith.truncf %0 : vector<16x16xf32> to vector<16x16xbf16>
    %c0_1 = arith.constant 0 : index
    %c0_2 = arith.constant 0 : index
    %2 = vector.load %arg1[%c0_1, %c0_2] : memref<16x128xbf16, #tpu.memory_space<vmem>>, vector<16x128xbf16>
    %cst = arith.constant dense<0.000000e+00> : vector<16x128xf32>
    %3 = tpu.matmul %1, %2, %cst {dimension_numbers = #tpu.dot_dimension_numbers<[1], [0], [0], [1], [0, 0, 1, 1], [], []>} : vector<16x16xbf16>, vector<16x128xbf16>, vector<16x128xf32> -> vector<16x128xf32>
    %c0_3 = arith.constant 0 : index
    %c0_4 = arith.constant 0 : index
    %4 = vector.load %arg2[%c0_3, %c0_4] : memref<1x128xf32, #tpu.memory_space<vmem>>, vector<1x128xf32>
    %5 = vector.broadcast %4 : vector<1x128xf32> to vector<16x128xf32>
    %6 = arith.addf %3, %5 : vector<16x128xf32>
    %7 = vector.extract_strided_slice %6 {offsets = [0, 0], sizes = [2, 128], strides = [1, 1]} : vector<16x128xf32> to vector<2x128xf32>
    %8 = vector.extract_strided_slice %6 {offsets = [2, 0], sizes = [2, 128], strides = [1, 1]} : vector<16x128xf32> to vector<2x128xf32>
    %9 = vector.extract_strided_slice %6 {offsets = [4, 0], sizes = [2, 128], strides = [1, 1]} : vector<16x128xf32> to vector<2x128xf32>
    %10 = vector.extract_strided_slice %6 {offsets = [6, 0], sizes = [2, 128], strides = [1, 1]} : vector<16x128xf32> to vector<2x128xf32>
    %11 = vector.extract_strided_slice %6 {offsets = [8, 0], sizes = [2, 128], strides = [1, 1]} : vector<16x128xf32> to vector<2x128xf32>
    %12 = vector.extract_strided_slice %6 {offsets = [10, 0], sizes = [2, 128], strides = [1, 1]} : vector<16x128xf32> to vector<2x128xf32>
    %13 = vector.extract_strided_slice %6 {offsets = [12, 0], sizes = [2, 128], strides = [1, 1]} : vector<16x128xf32> to vector<2x128xf32>
    %14 = vector.extract_strided_slice %6 {offsets = [14, 0], sizes = [2, 128], strides = [1, 1]} : vector<16x128xf32> to vector<2x128xf32>
    %c0_5 = arith.constant 0 : index
    %c0_6 = arith.constant 0 : index
    %15 = vector.load %arg4[%c0_5, %c0_6] : memref<32x256xbf16, #tpu.memory_space<vmem>>, vector<32x256xbf16>
    %cst_7 = arith.constant 0.000000e+00 : f32
    %16 = vector.broadcast %cst_7 : f32 to vector<2x32xf32>
    %cst_8 = arith.constant 0.000000e+00 : f32
    %17 = vector.broadcast %cst_8 : f32 to vector<2x128xf32>
    %18 = arith.addf %7, %17 : vector<2x128xf32>
    %19 = arith.negf %18 : vector<2x128xf32>
    %20 = math.exp %19 : vector<2x128xf32>
    %cst_9 = arith.constant 1.000000e+00 : f32
    %21 = vector.broadcast %cst_9 : f32 to vector<2x128xf32>
    %22 = arith.addf %21, %20 : vector<2x128xf32>
    %23 = arith.divf %21, %22 : vector<2x128xf32>
    %24 = vector.extract_strided_slice %23 {offsets = [0, 0], sizes = [2, 32], strides = [1, 1]} : vector<2x128xf32> to vector<2x32xf32>
    %25 = vector.extract_strided_slice %23 {offsets = [0, 32], sizes = [2, 32], strides = [1, 1]} : vector<2x128xf32> to vector<2x32xf32>
    %26 = vector.extract_strided_slice %23 {offsets = [0, 96], sizes = [2, 32], strides = [1, 1]} : vector<2x128xf32> to vector<2x32xf32>
    %27 = vector.extract_strided_slice %18 {offsets = [0, 64], sizes = [2, 32], strides = [1, 1]} : vector<2x128xf32> to vector<2x32xf32>
    %28 = math.tanh %27 : vector<2x32xf32>
    %29 = arith.mulf %25, %16 : vector<2x32xf32>
    %30 = arith.mulf %24, %28 : vector<2x32xf32>
    %31 = arith.addf %29, %30 : vector<2x32xf32>
    %32 = math.tanh %31 : vector<2x32xf32>
    %33 = arith.mulf %26, %32 : vector<2x32xf32>
    %34 = arith.truncf %33 : vector<2x32xf32> to vector<2x32xbf16>
    %cst_10 = arith.constant dense<0.000000e+00> : vector<2x256xf32>
    %35 = tpu.matmul %34, %15, %cst_10 {dimension_numbers = #tpu.dot_dimension_numbers<[1], [0], [0], [1], [0, 0, 1, 1], [], []>} : vector<2x32xbf16>, vector<32x256xbf16>, vector<2x256xf32> -> vector<2x256xf32>
    %36 = vector.extract_strided_slice %35 {offsets = [0, 0], sizes = [2, 128], strides = [1, 1]} : vector<2x256xf32> to vector<2x128xf32>
    %37 = vector.extract_strided_slice %35 {offsets = [0, 128], sizes = [2, 128], strides = [1, 1]} : vector<2x256xf32> to vector<2x128xf32>
    %c0_11 = arith.constant 0 : index
    %c0_12 = arith.constant 0 : index
    %38 = vector.load %arg3[%c0_11, %c0_12] : memref<1x128xf32, #tpu.memory_space<vmem>>, vector<1x128xf32>
    %39 = vector.broadcast %38 : vector<1x128xf32> to vector<2x128xf32>
    %40 = arith.addf %37, %39 : vector<2x128xf32>
    %41 = arith.addf %8, %36 : vector<2x128xf32>
    %42 = arith.negf %41 : vector<2x128xf32>
    %43 = math.exp %42 : vector<2x128xf32>
    %cst_13 = arith.constant 1.000000e+00 : f32
    %44 = vector.broadcast %cst_13 : f32 to vector<2x128xf32>
    %45 = arith.addf %44, %43 : vector<2x128xf32>
    %46 = arith.divf %44, %45 : vector<2x128xf32>
    %47 = vector.extract_strided_slice %46 {offsets = [0, 0], sizes = [2, 32], strides = [1, 1]} : vector<2x128xf32> to vector<2x32xf32>
    %48 = vector.extract_strided_slice %46 {offsets = [0, 32], sizes = [2, 32], strides = [1, 1]} : vector<2x128xf32> to vector<2x32xf32>
    %49 = vector.extract_strided_slice %46 {offsets = [0, 96], sizes = [2, 32], strides = [1, 1]} : vector<2x128xf32> to vector<2x32xf32>
    %50 = vector.extract_strided_slice %41 {offsets = [0, 64], sizes = [2, 32], strides = [1, 1]} : vector<2x128xf32> to vector<2x32xf32>
    %51 = math.tanh %50 : vector<2x32xf32>
    %52 = arith.mulf %48, %31 : vector<2x32xf32>
    %53 = arith.mulf %47, %51 : vector<2x32xf32>
    %54 = arith.addf %52, %53 : vector<2x32xf32>
    %55 = math.tanh %54 : vector<2x32xf32>
    %56 = arith.mulf %49, %55 : vector<2x32xf32>
    %57 = arith.truncf %56 : vector<2x32xf32> to vector<2x32xbf16>
    %cst_14 = arith.constant dense<0.000000e+00> : vector<2x256xf32>
    %58 = tpu.matmul %57, %15, %cst_14 {dimension_numbers = #tpu.dot_dimension_numbers<[1], [0], [0], [1], [0, 0, 1, 1], [], []>} : vector<2x32xbf16>, vector<32x256xbf16>, vector<2x256xf32> -> vector<2x256xf32>
    %59 = vector.extract_strided_slice %58 {offsets = [0, 0], sizes = [2, 128], strides = [1, 1]} : vector<2x256xf32> to vector<2x128xf32>
    %60 = vector.extract_strided_slice %58 {offsets = [0, 128], sizes = [2, 128], strides = [1, 1]} : vector<2x256xf32> to vector<2x128xf32>
    %c0_15 = arith.constant 0 : index
    %c0_16 = arith.constant 0 : index
    %61 = vector.load %arg3[%c0_15, %c0_16] : memref<1x128xf32, #tpu.memory_space<vmem>>, vector<1x128xf32>
    %62 = vector.broadcast %61 : vector<1x128xf32> to vector<2x128xf32>
    %63 = arith.addf %60, %62 : vector<2x128xf32>
    %64 = arith.addf %9, %59 : vector<2x128xf32>
    %65 = arith.negf %64 : vector<2x128xf32>
    %66 = math.exp %65 : vector<2x128xf32>
    %cst_17 = arith.constant 1.000000e+00 : f32
    %67 = vector.broadcast %cst_17 : f32 to vector<2x128xf32>
    %68 = arith.addf %67, %66 : vector<2x128xf32>
    %69 = arith.divf %67, %68 : vector<2x128xf32>
    %70 = vector.extract_strided_slice %69 {offsets = [0, 0], sizes = [2, 32], strides = [1, 1]} : vector<2x128xf32> to vector<2x32xf32>
    %71 = vector.extract_strided_slice %69 {offsets = [0, 32], sizes = [2, 32], strides = [1, 1]} : vector<2x128xf32> to vector<2x32xf32>
    %72 = vector.extract_strided_slice %69 {offsets = [0, 96], sizes = [2, 32], strides = [1, 1]} : vector<2x128xf32> to vector<2x32xf32>
    %73 = vector.extract_strided_slice %64 {offsets = [0, 64], sizes = [2, 32], strides = [1, 1]} : vector<2x128xf32> to vector<2x32xf32>
    %74 = math.tanh %73 : vector<2x32xf32>
    %75 = arith.mulf %71, %54 : vector<2x32xf32>
    %76 = arith.mulf %70, %74 : vector<2x32xf32>
    %77 = arith.addf %75, %76 : vector<2x32xf32>
    %78 = math.tanh %77 : vector<2x32xf32>
    %79 = arith.mulf %72, %78 : vector<2x32xf32>
    %80 = arith.truncf %79 : vector<2x32xf32> to vector<2x32xbf16>
    %cst_18 = arith.constant dense<0.000000e+00> : vector<2x256xf32>
    %81 = tpu.matmul %80, %15, %cst_18 {dimension_numbers = #tpu.dot_dimension_numbers<[1], [0], [0], [1], [0, 0, 1, 1], [], []>} : vector<2x32xbf16>, vector<32x256xbf16>, vector<2x256xf32> -> vector<2x256xf32>
    %82 = vector.extract_strided_slice %81 {offsets = [0, 0], sizes = [2, 128], strides = [1, 1]} : vector<2x256xf32> to vector<2x128xf32>
    %83 = vector.extract_strided_slice %81 {offsets = [0, 128], sizes = [2, 128], strides = [1, 1]} : vector<2x256xf32> to vector<2x128xf32>
    %c0_19 = arith.constant 0 : index
    %c0_20 = arith.constant 0 : index
    %84 = vector.load %arg3[%c0_19, %c0_20] : memref<1x128xf32, #tpu.memory_space<vmem>>, vector<1x128xf32>
    %85 = vector.broadcast %84 : vector<1x128xf32> to vector<2x128xf32>
    %86 = arith.addf %83, %85 : vector<2x128xf32>
    %87 = arith.addf %10, %82 : vector<2x128xf32>
    %88 = arith.negf %87 : vector<2x128xf32>
    %89 = math.exp %88 : vector<2x128xf32>
    %cst_21 = arith.constant 1.000000e+00 : f32
    %90 = vector.broadcast %cst_21 : f32 to vector<2x128xf32>
    %91 = arith.addf %90, %89 : vector<2x128xf32>
    %92 = arith.divf %90, %91 : vector<2x128xf32>
    %93 = vector.extract_strided_slice %92 {offsets = [0, 0], sizes = [2, 32], strides = [1, 1]} : vector<2x128xf32> to vector<2x32xf32>
    %94 = vector.extract_strided_slice %92 {offsets = [0, 32], sizes = [2, 32], strides = [1, 1]} : vector<2x128xf32> to vector<2x32xf32>
    %95 = vector.extract_strided_slice %92 {offsets = [0, 96], sizes = [2, 32], strides = [1, 1]} : vector<2x128xf32> to vector<2x32xf32>
    %96 = vector.extract_strided_slice %87 {offsets = [0, 64], sizes = [2, 32], strides = [1, 1]} : vector<2x128xf32> to vector<2x32xf32>
    %97 = math.tanh %96 : vector<2x32xf32>
    %98 = arith.mulf %94, %77 : vector<2x32xf32>
    %99 = arith.mulf %93, %97 : vector<2x32xf32>
    %100 = arith.addf %98, %99 : vector<2x32xf32>
    %101 = math.tanh %100 : vector<2x32xf32>
    %102 = arith.mulf %95, %101 : vector<2x32xf32>
    %103 = arith.truncf %102 : vector<2x32xf32> to vector<2x32xbf16>
    %cst_22 = arith.constant dense<0.000000e+00> : vector<2x256xf32>
    %104 = tpu.matmul %103, %15, %cst_22 {dimension_numbers = #tpu.dot_dimension_numbers<[1], [0], [0], [1], [0, 0, 1, 1], [], []>} : vector<2x32xbf16>, vector<32x256xbf16>, vector<2x256xf32> -> vector<2x256xf32>
    %105 = vector.extract_strided_slice %104 {offsets = [0, 0], sizes = [2, 128], strides = [1, 1]} : vector<2x256xf32> to vector<2x128xf32>
    %106 = vector.extract_strided_slice %104 {offsets = [0, 128], sizes = [2, 128], strides = [1, 1]} : vector<2x256xf32> to vector<2x128xf32>
    %c0_23 = arith.constant 0 : index
    %c0_24 = arith.constant 0 : index
    %107 = vector.load %arg3[%c0_23, %c0_24] : memref<1x128xf32, #tpu.memory_space<vmem>>, vector<1x128xf32>
    %108 = vector.broadcast %107 : vector<1x128xf32> to vector<2x128xf32>
    %109 = arith.addf %106, %108 : vector<2x128xf32>
    %110 = arith.addf %11, %105 : vector<2x128xf32>
    %111 = arith.negf %110 : vector<2x128xf32>
    %112 = math.exp %111 : vector<2x128xf32>
    %cst_25 = arith.constant 1.000000e+00 : f32
    %113 = vector.broadcast %cst_25 : f32 to vector<2x128xf32>
    %114 = arith.addf %113, %112 : vector<2x128xf32>
    %115 = arith.divf %113, %114 : vector<2x128xf32>
    %116 = vector.extract_strided_slice %115 {offsets = [0, 0], sizes = [2, 32], strides = [1, 1]} : vector<2x128xf32> to vector<2x32xf32>
    %117 = vector.extract_strided_slice %115 {offsets = [0, 32], sizes = [2, 32], strides = [1, 1]} : vector<2x128xf32> to vector<2x32xf32>
    %118 = vector.extract_strided_slice %115 {offsets = [0, 96], sizes = [2, 32], strides = [1, 1]} : vector<2x128xf32> to vector<2x32xf32>
    %119 = vector.extract_strided_slice %110 {offsets = [0, 64], sizes = [2, 32], strides = [1, 1]} : vector<2x128xf32> to vector<2x32xf32>
    %120 = math.tanh %119 : vector<2x32xf32>
    %121 = arith.mulf %117, %100 : vector<2x32xf32>
    %122 = arith.mulf %116, %120 : vector<2x32xf32>
    %123 = arith.addf %121, %122 : vector<2x32xf32>
    %124 = math.tanh %123 : vector<2x32xf32>
    %125 = arith.mulf %118, %124 : vector<2x32xf32>
    %126 = arith.truncf %125 : vector<2x32xf32> to vector<2x32xbf16>
    %cst_26 = arith.constant dense<0.000000e+00> : vector<2x256xf32>
    %127 = tpu.matmul %126, %15, %cst_26 {dimension_numbers = #tpu.dot_dimension_numbers<[1], [0], [0], [1], [0, 0, 1, 1], [], []>} : vector<2x32xbf16>, vector<32x256xbf16>, vector<2x256xf32> -> vector<2x256xf32>
    %128 = vector.extract_strided_slice %127 {offsets = [0, 0], sizes = [2, 128], strides = [1, 1]} : vector<2x256xf32> to vector<2x128xf32>
    %129 = vector.extract_strided_slice %127 {offsets = [0, 128], sizes = [2, 128], strides = [1, 1]} : vector<2x256xf32> to vector<2x128xf32>
    %c0_27 = arith.constant 0 : index
    %c0_28 = arith.constant 0 : index
    %130 = vector.load %arg3[%c0_27, %c0_28] : memref<1x128xf32, #tpu.memory_space<vmem>>, vector<1x128xf32>
    %131 = vector.broadcast %130 : vector<1x128xf32> to vector<2x128xf32>
    %132 = arith.addf %129, %131 : vector<2x128xf32>
    %133 = arith.addf %12, %128 : vector<2x128xf32>
    %134 = arith.negf %133 : vector<2x128xf32>
    %135 = math.exp %134 : vector<2x128xf32>
    %cst_29 = arith.constant 1.000000e+00 : f32
    %136 = vector.broadcast %cst_29 : f32 to vector<2x128xf32>
    %137 = arith.addf %136, %135 : vector<2x128xf32>
    %138 = arith.divf %136, %137 : vector<2x128xf32>
    %139 = vector.extract_strided_slice %138 {offsets = [0, 0], sizes = [2, 32], strides = [1, 1]} : vector<2x128xf32> to vector<2x32xf32>
    %140 = vector.extract_strided_slice %138 {offsets = [0, 32], sizes = [2, 32], strides = [1, 1]} : vector<2x128xf32> to vector<2x32xf32>
    %141 = vector.extract_strided_slice %138 {offsets = [0, 96], sizes = [2, 32], strides = [1, 1]} : vector<2x128xf32> to vector<2x32xf32>
    %142 = vector.extract_strided_slice %133 {offsets = [0, 64], sizes = [2, 32], strides = [1, 1]} : vector<2x128xf32> to vector<2x32xf32>
    %143 = math.tanh %142 : vector<2x32xf32>
    %144 = arith.mulf %140, %123 : vector<2x32xf32>
    %145 = arith.mulf %139, %143 : vector<2x32xf32>
    %146 = arith.addf %144, %145 : vector<2x32xf32>
    %147 = math.tanh %146 : vector<2x32xf32>
    %148 = arith.mulf %141, %147 : vector<2x32xf32>
    %149 = arith.truncf %148 : vector<2x32xf32> to vector<2x32xbf16>
    %cst_30 = arith.constant dense<0.000000e+00> : vector<2x256xf32>
    %150 = tpu.matmul %149, %15, %cst_30 {dimension_numbers = #tpu.dot_dimension_numbers<[1], [0], [0], [1], [0, 0, 1, 1], [], []>} : vector<2x32xbf16>, vector<32x256xbf16>, vector<2x256xf32> -> vector<2x256xf32>
    %151 = vector.extract_strided_slice %150 {offsets = [0, 0], sizes = [2, 128], strides = [1, 1]} : vector<2x256xf32> to vector<2x128xf32>
    %152 = vector.extract_strided_slice %150 {offsets = [0, 128], sizes = [2, 128], strides = [1, 1]} : vector<2x256xf32> to vector<2x128xf32>
    %c0_31 = arith.constant 0 : index
    %c0_32 = arith.constant 0 : index
    %153 = vector.load %arg3[%c0_31, %c0_32] : memref<1x128xf32, #tpu.memory_space<vmem>>, vector<1x128xf32>
    %154 = vector.broadcast %153 : vector<1x128xf32> to vector<2x128xf32>
    %155 = arith.addf %152, %154 : vector<2x128xf32>
    %156 = arith.addf %13, %151 : vector<2x128xf32>
    %157 = arith.negf %156 : vector<2x128xf32>
    %158 = math.exp %157 : vector<2x128xf32>
    %cst_33 = arith.constant 1.000000e+00 : f32
    %159 = vector.broadcast %cst_33 : f32 to vector<2x128xf32>
    %160 = arith.addf %159, %158 : vector<2x128xf32>
    %161 = arith.divf %159, %160 : vector<2x128xf32>
    %162 = vector.extract_strided_slice %161 {offsets = [0, 0], sizes = [2, 32], strides = [1, 1]} : vector<2x128xf32> to vector<2x32xf32>
    %163 = vector.extract_strided_slice %161 {offsets = [0, 32], sizes = [2, 32], strides = [1, 1]} : vector<2x128xf32> to vector<2x32xf32>
    %164 = vector.extract_strided_slice %161 {offsets = [0, 96], sizes = [2, 32], strides = [1, 1]} : vector<2x128xf32> to vector<2x32xf32>
    %165 = vector.extract_strided_slice %156 {offsets = [0, 64], sizes = [2, 32], strides = [1, 1]} : vector<2x128xf32> to vector<2x32xf32>
    %166 = math.tanh %165 : vector<2x32xf32>
    %167 = arith.mulf %163, %146 : vector<2x32xf32>
    %168 = arith.mulf %162, %166 : vector<2x32xf32>
    %169 = arith.addf %167, %168 : vector<2x32xf32>
    %170 = math.tanh %169 : vector<2x32xf32>
    %171 = arith.mulf %164, %170 : vector<2x32xf32>
    %172 = arith.truncf %171 : vector<2x32xf32> to vector<2x32xbf16>
    %cst_34 = arith.constant dense<0.000000e+00> : vector<2x256xf32>
    %173 = tpu.matmul %172, %15, %cst_34 {dimension_numbers = #tpu.dot_dimension_numbers<[1], [0], [0], [1], [0, 0, 1, 1], [], []>} : vector<2x32xbf16>, vector<32x256xbf16>, vector<2x256xf32> -> vector<2x256xf32>
    %174 = vector.extract_strided_slice %173 {offsets = [0, 0], sizes = [2, 128], strides = [1, 1]} : vector<2x256xf32> to vector<2x128xf32>
    %175 = vector.extract_strided_slice %173 {offsets = [0, 128], sizes = [2, 128], strides = [1, 1]} : vector<2x256xf32> to vector<2x128xf32>
    %c0_35 = arith.constant 0 : index
    %c0_36 = arith.constant 0 : index
    %176 = vector.load %arg3[%c0_35, %c0_36] : memref<1x128xf32, #tpu.memory_space<vmem>>, vector<1x128xf32>
    %177 = vector.broadcast %176 : vector<1x128xf32> to vector<2x128xf32>
    %178 = arith.addf %175, %177 : vector<2x128xf32>
    %179 = arith.addf %14, %174 : vector<2x128xf32>
    %180 = arith.negf %179 : vector<2x128xf32>
    %181 = math.exp %180 : vector<2x128xf32>
    %cst_37 = arith.constant 1.000000e+00 : f32
    %182 = vector.broadcast %cst_37 : f32 to vector<2x128xf32>
    %183 = arith.addf %182, %181 : vector<2x128xf32>
    %184 = arith.divf %182, %183 : vector<2x128xf32>
    %185 = vector.extract_strided_slice %184 {offsets = [0, 0], sizes = [2, 32], strides = [1, 1]} : vector<2x128xf32> to vector<2x32xf32>
    %186 = vector.extract_strided_slice %184 {offsets = [0, 32], sizes = [2, 32], strides = [1, 1]} : vector<2x128xf32> to vector<2x32xf32>
    %187 = vector.extract_strided_slice %184 {offsets = [0, 96], sizes = [2, 32], strides = [1, 1]} : vector<2x128xf32> to vector<2x32xf32>
    %188 = vector.extract_strided_slice %179 {offsets = [0, 64], sizes = [2, 32], strides = [1, 1]} : vector<2x128xf32> to vector<2x32xf32>
    %189 = math.tanh %188 : vector<2x32xf32>
    %190 = arith.mulf %186, %169 : vector<2x32xf32>
    %191 = arith.mulf %185, %189 : vector<2x32xf32>
    %192 = arith.addf %190, %191 : vector<2x32xf32>
    %193 = math.tanh %192 : vector<2x32xf32>
    %194 = arith.mulf %187, %193 : vector<2x32xf32>
    %195 = arith.truncf %194 : vector<2x32xf32> to vector<2x32xbf16>
    %cst_38 = arith.constant dense<0.000000e+00> : vector<2x256xf32>
    %196 = tpu.matmul %195, %15, %cst_38 {dimension_numbers = #tpu.dot_dimension_numbers<[1], [0], [0], [1], [0, 0, 1, 1], [], []>} : vector<2x32xbf16>, vector<32x256xbf16>, vector<2x256xf32> -> vector<2x256xf32>
    %197 = vector.extract_strided_slice %196 {offsets = [0, 128], sizes = [2, 128], strides = [1, 1]} : vector<2x256xf32> to vector<2x128xf32>
    %c0_39 = arith.constant 0 : index
    %c0_40 = arith.constant 0 : index
    %198 = vector.load %arg3[%c0_39, %c0_40] : memref<1x128xf32, #tpu.memory_space<vmem>>, vector<1x128xf32>
    %199 = vector.broadcast %198 : vector<1x128xf32> to vector<2x128xf32>
    %200 = arith.addf %197, %199 : vector<2x128xf32>
    %c0_41 = arith.constant 0 : index
    %c0_42 = arith.constant 0 : index
    %201 = vector.load %arg5[%c0_41, %c0_42] : memref<32x128xbf16, #tpu.memory_space<vmem>>, vector<32x128xbf16>
    %cst_43 = arith.constant 0.000000e+00 : f32
    %202 = vector.broadcast %cst_43 : f32 to vector<2x32xf32>
    %cst_44 = arith.constant 0.000000e+00 : f32
    %203 = vector.broadcast %cst_44 : f32 to vector<2x128xf32>
    %204 = arith.addf %40, %203 : vector<2x128xf32>
    %205 = arith.negf %204 : vector<2x128xf32>
    %206 = math.exp %205 : vector<2x128xf32>
    %cst_45 = arith.constant 1.000000e+00 : f32
    %207 = vector.broadcast %cst_45 : f32 to vector<2x128xf32>
    %208 = arith.addf %207, %206 : vector<2x128xf32>
    %209 = arith.divf %207, %208 : vector<2x128xf32>
    %210 = vector.extract_strided_slice %209 {offsets = [0, 0], sizes = [2, 32], strides = [1, 1]} : vector<2x128xf32> to vector<2x32xf32>
    %211 = vector.extract_strided_slice %209 {offsets = [0, 32], sizes = [2, 32], strides = [1, 1]} : vector<2x128xf32> to vector<2x32xf32>
    %212 = vector.extract_strided_slice %209 {offsets = [0, 96], sizes = [2, 32], strides = [1, 1]} : vector<2x128xf32> to vector<2x32xf32>
    %213 = vector.extract_strided_slice %204 {offsets = [0, 64], sizes = [2, 32], strides = [1, 1]} : vector<2x128xf32> to vector<2x32xf32>
    %214 = math.tanh %213 : vector<2x32xf32>
    %215 = arith.mulf %211, %202 : vector<2x32xf32>
    %216 = arith.mulf %210, %214 : vector<2x32xf32>
    %217 = arith.addf %215, %216 : vector<2x32xf32>
    %218 = math.tanh %217 : vector<2x32xf32>
    %219 = arith.mulf %212, %218 : vector<2x32xf32>
    %220 = arith.truncf %219 : vector<2x32xf32> to vector<2x32xbf16>
    %cst_46 = arith.constant dense<0.000000e+00> : vector<2x128xf32>
    %221 = tpu.matmul %220, %201, %cst_46 {dimension_numbers = #tpu.dot_dimension_numbers<[1], [0], [0], [1], [0, 0, 1, 1], [], []>} : vector<2x32xbf16>, vector<32x128xbf16>, vector<2x128xf32> -> vector<2x128xf32>
    %222 = arith.addf %63, %221 : vector<2x128xf32>
    %223 = arith.negf %222 : vector<2x128xf32>
    %224 = math.exp %223 : vector<2x128xf32>
    %cst_47 = arith.constant 1.000000e+00 : f32
    %225 = vector.broadcast %cst_47 : f32 to vector<2x128xf32>
    %226 = arith.addf %225, %224 : vector<2x128xf32>
    %227 = arith.divf %225, %226 : vector<2x128xf32>
    %228 = vector.extract_strided_slice %227 {offsets = [0, 0], sizes = [2, 32], strides = [1, 1]} : vector<2x128xf32> to vector<2x32xf32>
    %229 = vector.extract_strided_slice %227 {offsets = [0, 32], sizes = [2, 32], strides = [1, 1]} : vector<2x128xf32> to vector<2x32xf32>
    %230 = vector.extract_strided_slice %227 {offsets = [0, 96], sizes = [2, 32], strides = [1, 1]} : vector<2x128xf32> to vector<2x32xf32>
    %231 = vector.extract_strided_slice %222 {offsets = [0, 64], sizes = [2, 32], strides = [1, 1]} : vector<2x128xf32> to vector<2x32xf32>
    %232 = math.tanh %231 : vector<2x32xf32>
    %233 = arith.mulf %229, %217 : vector<2x32xf32>
    %234 = arith.mulf %228, %232 : vector<2x32xf32>
    %235 = arith.addf %233, %234 : vector<2x32xf32>
    %236 = math.tanh %235 : vector<2x32xf32>
    %237 = arith.mulf %230, %236 : vector<2x32xf32>
    %238 = arith.truncf %237 : vector<2x32xf32> to vector<2x32xbf16>
    %cst_48 = arith.constant dense<0.000000e+00> : vector<2x128xf32>
    %239 = tpu.matmul %238, %201, %cst_48 {dimension_numbers = #tpu.dot_dimension_numbers<[1], [0], [0], [1], [0, 0, 1, 1], [], []>} : vector<2x32xbf16>, vector<32x128xbf16>, vector<2x128xf32> -> vector<2x128xf32>
    %240 = arith.addf %86, %239 : vector<2x128xf32>
    %241 = arith.negf %240 : vector<2x128xf32>
    %242 = math.exp %241 : vector<2x128xf32>
    %cst_49 = arith.constant 1.000000e+00 : f32
    %243 = vector.broadcast %cst_49 : f32 to vector<2x128xf32>
    %244 = arith.addf %243, %242 : vector<2x128xf32>
    %245 = arith.divf %243, %244 : vector<2x128xf32>
    %246 = vector.extract_strided_slice %245 {offsets = [0, 0], sizes = [2, 32], strides = [1, 1]} : vector<2x128xf32> to vector<2x32xf32>
    %247 = vector.extract_strided_slice %245 {offsets = [0, 32], sizes = [2, 32], strides = [1, 1]} : vector<2x128xf32> to vector<2x32xf32>
    %248 = vector.extract_strided_slice %245 {offsets = [0, 96], sizes = [2, 32], strides = [1, 1]} : vector<2x128xf32> to vector<2x32xf32>
    %249 = vector.extract_strided_slice %240 {offsets = [0, 64], sizes = [2, 32], strides = [1, 1]} : vector<2x128xf32> to vector<2x32xf32>
    %250 = math.tanh %249 : vector<2x32xf32>
    %251 = arith.mulf %247, %235 : vector<2x32xf32>
    %252 = arith.mulf %246, %250 : vector<2x32xf32>
    %253 = arith.addf %251, %252 : vector<2x32xf32>
    %254 = math.tanh %253 : vector<2x32xf32>
    %255 = arith.mulf %248, %254 : vector<2x32xf32>
    %256 = arith.truncf %255 : vector<2x32xf32> to vector<2x32xbf16>
    %cst_50 = arith.constant dense<0.000000e+00> : vector<2x128xf32>
    %257 = tpu.matmul %256, %201, %cst_50 {dimension_numbers = #tpu.dot_dimension_numbers<[1], [0], [0], [1], [0, 0, 1, 1], [], []>} : vector<2x32xbf16>, vector<32x128xbf16>, vector<2x128xf32> -> vector<2x128xf32>
    %258 = arith.addf %109, %257 : vector<2x128xf32>
    %259 = arith.negf %258 : vector<2x128xf32>
    %260 = math.exp %259 : vector<2x128xf32>
    %cst_51 = arith.constant 1.000000e+00 : f32
    %261 = vector.broadcast %cst_51 : f32 to vector<2x128xf32>
    %262 = arith.addf %261, %260 : vector<2x128xf32>
    %263 = arith.divf %261, %262 : vector<2x128xf32>
    %264 = vector.extract_strided_slice %263 {offsets = [0, 0], sizes = [2, 32], strides = [1, 1]} : vector<2x128xf32> to vector<2x32xf32>
    %265 = vector.extract_strided_slice %263 {offsets = [0, 32], sizes = [2, 32], strides = [1, 1]} : vector<2x128xf32> to vector<2x32xf32>
    %266 = vector.extract_strided_slice %263 {offsets = [0, 96], sizes = [2, 32], strides = [1, 1]} : vector<2x128xf32> to vector<2x32xf32>
    %267 = vector.extract_strided_slice %258 {offsets = [0, 64], sizes = [2, 32], strides = [1, 1]} : vector<2x128xf32> to vector<2x32xf32>
    %268 = math.tanh %267 : vector<2x32xf32>
    %269 = arith.mulf %265, %253 : vector<2x32xf32>
    %270 = arith.mulf %264, %268 : vector<2x32xf32>
    %271 = arith.addf %269, %270 : vector<2x32xf32>
    %272 = math.tanh %271 : vector<2x32xf32>
    %273 = arith.mulf %266, %272 : vector<2x32xf32>
    %274 = arith.truncf %273 : vector<2x32xf32> to vector<2x32xbf16>
    %cst_52 = arith.constant dense<0.000000e+00> : vector<2x128xf32>
    %275 = tpu.matmul %274, %201, %cst_52 {dimension_numbers = #tpu.dot_dimension_numbers<[1], [0], [0], [1], [0, 0, 1, 1], [], []>} : vector<2x32xbf16>, vector<32x128xbf16>, vector<2x128xf32> -> vector<2x128xf32>
    %276 = arith.addf %132, %275 : vector<2x128xf32>
    %277 = arith.negf %276 : vector<2x128xf32>
    %278 = math.exp %277 : vector<2x128xf32>
    %cst_53 = arith.constant 1.000000e+00 : f32
    %279 = vector.broadcast %cst_53 : f32 to vector<2x128xf32>
    %280 = arith.addf %279, %278 : vector<2x128xf32>
    %281 = arith.divf %279, %280 : vector<2x128xf32>
    %282 = vector.extract_strided_slice %281 {offsets = [0, 0], sizes = [2, 32], strides = [1, 1]} : vector<2x128xf32> to vector<2x32xf32>
    %283 = vector.extract_strided_slice %281 {offsets = [0, 32], sizes = [2, 32], strides = [1, 1]} : vector<2x128xf32> to vector<2x32xf32>
    %284 = vector.extract_strided_slice %281 {offsets = [0, 96], sizes = [2, 32], strides = [1, 1]} : vector<2x128xf32> to vector<2x32xf32>
    %285 = vector.extract_strided_slice %276 {offsets = [0, 64], sizes = [2, 32], strides = [1, 1]} : vector<2x128xf32> to vector<2x32xf32>
    %286 = math.tanh %285 : vector<2x32xf32>
    %287 = arith.mulf %283, %271 : vector<2x32xf32>
    %288 = arith.mulf %282, %286 : vector<2x32xf32>
    %289 = arith.addf %287, %288 : vector<2x32xf32>
    %290 = math.tanh %289 : vector<2x32xf32>
    %291 = arith.mulf %284, %290 : vector<2x32xf32>
    %292 = arith.truncf %291 : vector<2x32xf32> to vector<2x32xbf16>
    %cst_54 = arith.constant dense<0.000000e+00> : vector<2x128xf32>
    %293 = tpu.matmul %292, %201, %cst_54 {dimension_numbers = #tpu.dot_dimension_numbers<[1], [0], [0], [1], [0, 0, 1, 1], [], []>} : vector<2x32xbf16>, vector<32x128xbf16>, vector<2x128xf32> -> vector<2x128xf32>
    %294 = arith.addf %155, %293 : vector<2x128xf32>
    %295 = arith.negf %294 : vector<2x128xf32>
    %296 = math.exp %295 : vector<2x128xf32>
    %cst_55 = arith.constant 1.000000e+00 : f32
    %297 = vector.broadcast %cst_55 : f32 to vector<2x128xf32>
    %298 = arith.addf %297, %296 : vector<2x128xf32>
    %299 = arith.divf %297, %298 : vector<2x128xf32>
    %300 = vector.extract_strided_slice %299 {offsets = [0, 0], sizes = [2, 32], strides = [1, 1]} : vector<2x128xf32> to vector<2x32xf32>
    %301 = vector.extract_strided_slice %299 {offsets = [0, 32], sizes = [2, 32], strides = [1, 1]} : vector<2x128xf32> to vector<2x32xf32>
    %302 = vector.extract_strided_slice %299 {offsets = [0, 96], sizes = [2, 32], strides = [1, 1]} : vector<2x128xf32> to vector<2x32xf32>
    %303 = vector.extract_strided_slice %294 {offsets = [0, 64], sizes = [2, 32], strides = [1, 1]} : vector<2x128xf32> to vector<2x32xf32>
    %304 = math.tanh %303 : vector<2x32xf32>
    %305 = arith.mulf %301, %289 : vector<2x32xf32>
    %306 = arith.mulf %300, %304 : vector<2x32xf32>
    %307 = arith.addf %305, %306 : vector<2x32xf32>
    %308 = math.tanh %307 : vector<2x32xf32>
    %309 = arith.mulf %302, %308 : vector<2x32xf32>
    %310 = arith.truncf %309 : vector<2x32xf32> to vector<2x32xbf16>
    %cst_56 = arith.constant dense<0.000000e+00> : vector<2x128xf32>
    %311 = tpu.matmul %310, %201, %cst_56 {dimension_numbers = #tpu.dot_dimension_numbers<[1], [0], [0], [1], [0, 0, 1, 1], [], []>} : vector<2x32xbf16>, vector<32x128xbf16>, vector<2x128xf32> -> vector<2x128xf32>
    %312 = arith.addf %178, %311 : vector<2x128xf32>
    %313 = arith.negf %312 : vector<2x128xf32>
    %314 = math.exp %313 : vector<2x128xf32>
    %cst_57 = arith.constant 1.000000e+00 : f32
    %315 = vector.broadcast %cst_57 : f32 to vector<2x128xf32>
    %316 = arith.addf %315, %314 : vector<2x128xf32>
    %317 = arith.divf %315, %316 : vector<2x128xf32>
    %318 = vector.extract_strided_slice %317 {offsets = [0, 0], sizes = [2, 32], strides = [1, 1]} : vector<2x128xf32> to vector<2x32xf32>
    %319 = vector.extract_strided_slice %317 {offsets = [0, 32], sizes = [2, 32], strides = [1, 1]} : vector<2x128xf32> to vector<2x32xf32>
    %320 = vector.extract_strided_slice %317 {offsets = [0, 96], sizes = [2, 32], strides = [1, 1]} : vector<2x128xf32> to vector<2x32xf32>
    %321 = vector.extract_strided_slice %312 {offsets = [0, 64], sizes = [2, 32], strides = [1, 1]} : vector<2x128xf32> to vector<2x32xf32>
    %322 = math.tanh %321 : vector<2x32xf32>
    %323 = arith.mulf %319, %307 : vector<2x32xf32>
    %324 = arith.mulf %318, %322 : vector<2x32xf32>
    %325 = arith.addf %323, %324 : vector<2x32xf32>
    %326 = math.tanh %325 : vector<2x32xf32>
    %327 = arith.mulf %320, %326 : vector<2x32xf32>
    %328 = arith.truncf %327 : vector<2x32xf32> to vector<2x32xbf16>
    %cst_58 = arith.constant dense<0.000000e+00> : vector<2x128xf32>
    %329 = tpu.matmul %328, %201, %cst_58 {dimension_numbers = #tpu.dot_dimension_numbers<[1], [0], [0], [1], [0, 0, 1, 1], [], []>} : vector<2x32xbf16>, vector<32x128xbf16>, vector<2x128xf32> -> vector<2x128xf32>
    %330 = arith.addf %200, %329 : vector<2x128xf32>
    %331 = arith.negf %330 : vector<2x128xf32>
    %332 = math.exp %331 : vector<2x128xf32>
    %cst_59 = arith.constant 1.000000e+00 : f32
    %333 = vector.broadcast %cst_59 : f32 to vector<2x128xf32>
    %334 = arith.addf %333, %332 : vector<2x128xf32>
    %335 = arith.divf %333, %334 : vector<2x128xf32>
    %336 = vector.extract_strided_slice %335 {offsets = [0, 0], sizes = [2, 32], strides = [1, 1]} : vector<2x128xf32> to vector<2x32xf32>
    %337 = vector.extract_strided_slice %335 {offsets = [0, 32], sizes = [2, 32], strides = [1, 1]} : vector<2x128xf32> to vector<2x32xf32>
    %338 = vector.extract_strided_slice %335 {offsets = [0, 96], sizes = [2, 32], strides = [1, 1]} : vector<2x128xf32> to vector<2x32xf32>
    %339 = vector.extract_strided_slice %330 {offsets = [0, 64], sizes = [2, 32], strides = [1, 1]} : vector<2x128xf32> to vector<2x32xf32>
    %340 = math.tanh %339 : vector<2x32xf32>
    %341 = arith.mulf %337, %325 : vector<2x32xf32>
    %342 = arith.mulf %336, %340 : vector<2x32xf32>
    %343 = arith.addf %341, %342 : vector<2x32xf32>
    %344 = math.tanh %343 : vector<2x32xf32>
    %345 = arith.mulf %338, %344 : vector<2x32xf32>
    %346 = arith.truncf %345 : vector<2x32xf32> to vector<2x32xbf16>
    %c0_60 = arith.constant 0 : index
    %c0_61 = arith.constant 0 : index
    %347 = vector.load %arg6[%c0_60, %c0_61] : memref<32x8xbf16, #tpu.memory_space<vmem>>, vector<32x8xbf16>
    %cst_62 = arith.constant dense<0.000000e+00> : vector<2x8xf32>
    %348 = tpu.matmul %346, %347, %cst_62 {dimension_numbers = #tpu.dot_dimension_numbers<[1], [0], [0], [1], [0, 0, 1, 1], [], []>} : vector<2x32xbf16>, vector<32x8xbf16>, vector<2x8xf32> -> vector<2x8xf32>
    %c0_63 = arith.constant 0 : index
    %c0_64 = arith.constant 0 : index
    %349 = vector.load %arg7[%c0_63, %c0_64] : memref<1x8xf32, #tpu.memory_space<vmem>>, vector<1x8xf32>
    %350 = vector.broadcast %349 : vector<1x8xf32> to vector<2x8xf32>
    %351 = arith.addf %348, %350 : vector<2x8xf32>
    %c0_65 = arith.constant 0 : index
    %c0_66 = arith.constant 0 : index
    %352 = vector.load %arg8[%c0_65, %c0_66] : memref<2x8xf32, #tpu.memory_space<vmem>>, vector<2x8xf32>
    tpu.vector_store %arg8[%c0_65, %c0_66], %351 {strides = array<i32>} : memref<2x8xf32, #tpu.memory_space<vmem>>, vector<2x8xf32>,
    return
  }
}

</mosaic_0001>

<llo_original>
// kernel: forward.1
$region0: #{forward.1}
  #allocation0 [shape = 'u32[]', space=smem, size = 0x4, offset = 0x4, fixed_abs, tag = 'smem constant byte address 0x4 - core index']
  #allocation1 [shape = 'u32[144,128]{1,0:T(1,128)}', space=vmem, size = 0x12000, scoped, tag = 'internal scratch']
  %s0 = inlined_call_operand.vmem [shape: f32[16,16], index: 0, kind: input, shape index: {}]
  %s1 = inlined_call_operand.vmem [shape: bf16[16,128], index: 1, kind: input, shape index: {}]
  %s2 = inlined_call_operand.vmem [shape: f32[1,128], index: 2, kind: input, shape index: {}]
  %s3 = inlined_call_operand.vmem [shape: f32[1,128], index: 3, kind: input, shape index: {}]
  %s4 = inlined_call_operand.vmem [shape: bf16[32,256], index: 4, kind: input, shape index: {}]
  %s5 = inlined_call_operand.vmem [shape: bf16[32,128], index: 5, kind: input, shape index: {}]
  %s6 = inlined_call_operand.vmem [shape: bf16[32,8], index: 6, kind: input, shape index: {}]
  %s7 = inlined_call_operand.vmem [shape: f32[1,8], index: 7, kind: input, shape index: {}]
  %s8 = inlined_call_operand.hbm [shape: f32[2,8], index: 8, kind: output, shape index: {}]
  %s9 = sld [smem:[#allocation0]]
  $region42: #{forward.1} parent=0
    _
  %s11 = ssub.s32 1, %s9
  %s12 = scalar_select 0, %s11, %s9
  $region1: #{forward.1} parent=0
    #allocation2 [shape = 'u8[1024]{0}', space=vmem, size = 0x400, scoped, tag = 'output window, operand 0, single buffered']
    #allocation3 [shape = 's32[1]{0}', space=sflag, size = 0x4, scoped, tag = 'scoped memory for forward.1']
    %13 = vsyncpa [#allocation3], 0
    // Predicated region
    $region2: #{forward.1} parent=1 // pred_check
      _
    $region3: #{forward.1} parent=1 // pred_check_branch
      %15 = sbr.rel (0) target = $region5
    $region4: #{forward.1} parent=1 // pred_region
      _
    $region5: #{forward.1} parent=1 // pred_fallthru
      _
    // Predicated region
    $region6: #{forward.1} parent=1 // pred_check
      _
    $region7: #{forward.1} parent=1 // pred_check_branch
      %17 = sbr.rel (0) target = $region9
    $region8: #{forward.1} parent=1 // pred_region
      _
    $region9: #{forward.1} parent=1 // pred_fallthru
      _
    // Predicated region
    $region10: #{forward.1} parent=1 // pred_check
      _
    $region11: #{forward.1} parent=1 // pred_check_branch
      %19 = sbr.rel (0) target = $region13
    $region12: #{forward.1} parent=1 // pred_region
      _
    $region13: #{forward.1} parent=1 // pred_fallthru
      _
    // Predicated region
    $region14: #{forward.1} parent=1 // pred_check
      _
    $region15: #{forward.1} parent=1 // pred_check_branch
      %21 = sbr.rel (0) target = $region17
    $region16: #{forward.1} parent=1 // pred_region
      _
    $region17: #{forward.1} parent=1 // pred_fallthru
      _
    // Predicated region
    $region18: #{forward.1} parent=1 // pred_check
      _
    $region19: #{forward.1} parent=1 // pred_check_branch
      %23 = sbr.rel (0) target = $region21
    $region20: #{forward.1} parent=1 // pred_region
      _
    $region21: #{forward.1} parent=1 // pred_fallthru
      _
    // Predicated region
    $region22: #{forward.1} parent=1 // pred_check
      _
    $region23: #{forward.1} parent=1 // pred_check_branch
      %25 = sbr.rel (0) target = $region25
    $region24: #{forward.1} parent=1 // pred_region
      _
    $region25: #{forward.1} parent=1 // pred_fallthru
      _
    // Predicated region
    $region26: #{forward.1} parent=1 // pred_check
      _
    $region27: #{forward.1} parent=1 // pred_check_branch
      %27 = sbr.rel (0) target = $region29
    $region28: #{forward.1} parent=1 // pred_region
      _
    $region29: #{forward.1} parent=1 // pred_fallthru
      _
    // Predicated region
    $region30: #{forward.1} parent=1 // pred_check
      _
    $region31: #{forward.1} parent=1 // pred_check_branch
      %29 = sbr.rel (0) target = $region33
    $region32: #{forward.1} parent=1 // pred_region
      _
    $region33: #{forward.1} parent=1 // pred_fallthru
      _
    %v31 = vld [vmem:[%s0] sm:$0xff]
    %v32 = vld [vmem:[%s0 + $0x8] sm:$0xff]
    %v33 = vpack.c.bf16 %v32, %v31
    %v34 = vld [vmem:[%s1] sm:$0xf]
    %v35 = vld [vmem:[%s1 + $0x4] sm:$0xf]
    %v36 = vld [vmem:[%s2] sm:$0x1]
    %v38 = vlaneseq
    %v39 = vshrl.u32 %v38, 7
    %v40 = vsub.s32 0, %v39
    %v41 = vrot.slane %v36, %v40
    %v45 = vunpack.c.l.b16 %v34
    %v46 = vunpack.c.l.b16 %v35
    %v47 = vpack.c.b16 %v46, %v45
    %vm49 = vcmask 130048
    %v51 = vsel %vm49, %v33, 0
    %53 = vmatprep.subr.bf16.mxu0 0
    %54 = vmatpush1.bf16.msra.mxu0 %v47
    %55 = vmatprep.subr.bf16.mxu0 0
    %56 = vmatpush1.bf16.msra.mxu0 0
    %57 = vmatprep.subr.bf16.mxu0 0
    %58 = vmatpush1.bf16.msra.mxu0 0
    %59 = vmatprep.subr.bf16.mxu0 0
    %60 = vmatpush1.bf16.msra.mxu0 0
    %61 = vmatprep.subr.bf16.mxu0 0
    %62 = vmatpush1.bf16.msra.mxu0 0
    %63 = vmatprep.subr.bf16.mxu0 0
    %64 = vmatpush1.bf16.msra.mxu0 0
    %65 = vmatprep.subr.bf16.mxu0 0
    %66 = vmatpush1.bf16.msra.mxu0 0
    %67 = vmatprep.subr.bf16.mxu0 0
    %68 = vmatpush1.bf16.msra.mxu0 0
    %69 = vmatprep.subr.bf16.mxu0 0
    %70 = vmatpush1.bf16.msra.mxu0 0
    %71 = vmatprep.subr.bf16.mxu0 0
    %72 = vmatpush1.bf16.msra.mxu0 0
    %73 = vmatprep.subr.bf16.mxu0 0
    %74 = vmatpush1.bf16.msra.mxu0 0
    %75 = vmatprep.subr.bf16.mxu0 0
    %76 = vmatpush1.bf16.msra.mxu0 0
    %77 = vmatprep.subr.bf16.mxu0 0
    %78 = vmatpush1.bf16.msra.mxu0 0
    %79 = vmatprep.subr.bf16.mxu0 0
    %80 = vmatpush1.bf16.msra.mxu0 0
    %81 = vmatprep.subr.bf16.mxu0 0
    %82 = vmatpush1.bf16.msra.mxu0 0
    %83 = vmatprep.subr.bf16.mxu0 0
    %84 = vmatpush1.bf16.msra.mxu0 0
    %85 = vmatprep.mubr.bf16.mxu0 0
    %86 = vmatmul.mubr.bf16.gmra.mrb[0].mxu0 %v51
    %v87 = vpop.f32.mrb[0].mxu0
    %v88 = vadd.f32 %v41, %v87
    %v89 = vpop.f32.mrb[0].mxu0
    %v90 = vpop.f32.mrb[0].mxu0
    %v91 = vadd.f32 %v41, %v90
    %v92 = vpop.f32.mrb[0].mxu0
    %93 = vdwg.mxu0
    %v94 = vld [vmem:[%s4] sm:$0xff]
    %v95 = vld [vmem:[%s4 + $0x8] sm:$0xff]
    %v96 = vld [vmem:[%s4 + $0x10] sm:$0xff]
    %v97 = vld [vmem:[%s4 + $0x18] sm:$0xff]
    %v98 = vadd.f32 %v88, 0.0
    %v99 = vxor.u32 %v98, 2147483648
    %v100 = vmul.f32 %v99, 1.442695
    %v101 = vpow.pop %v100
    %v102 = vadd.f32 %v101, 1.0
    %v103 = vrcp.pop %v102
    %v104 = vmul.f32 1.0, %v103
    %v105 = vtanh.pop %v98
    %v106 = vmul.f32 %v104, 0.0
    %108 = vrot.lane.b32.xlu0 %v105, 64
    %v109 = vpop.permute.xlu0 %108
    %v111 = vmul.f32 %v104, %v109
    %113 = vrot.lane.b32.xlu0 %v111, 32
    %v114 = vpop.permute.xlu0 %113
    %v116 = vadd.f32 %v106, %v114
    %v117 = vtanh.pop %v116
    %119 = vrot.lane.b32.xlu0 %v117, 64
    %v120 = vpop.permute.xlu0 %119
    %v122 = vmul.f32 %v104, %v120
    %v123 = vpack.c.bf16 %v122, %v122
    %125 = vrot.lane.b32.xlu0 %v123, 32
    %v126 = vpop.permute.xlu0 %125
    %v131 = vunpack.c.l.b16 %v94
    %v132 = vunpack.c.h.b16 %v94
    %v133 = vunpack.c.l.b16 %v95
    %v134 = vunpack.c.h.b16 %v95
    %v135 = vunpack.c.l.b16 %v96
    %v136 = vunpack.c.h.b16 %v96
    %v137 = vunpack.c.l.b16 %v97
    %v138 = vunpack.c.h.b16 %v97
    %v139 = vpack.c.b16 %v133, %v131
    %v140 = vpack.c.b16 %v134, %v132
    %v141 = vpack.c.b16 %v137, %v135
    %v142 = vpack.c.b16 %v138, %v136
    %vm147 = vcmask 261120
    %v149 = vsel %vm147, %v126, 0
    %151 = vmatprep.subr.bf16.mxu0 %v140
    %152 = vmatpush1.bf16.msra.mxu0 %v139
    %153 = vmatprep.subr.bf16.mxu0 %v142
    %154 = vmatpush1.bf16.msra.mxu0 %v141
    %155 = vmatprep.subr.bf16.mxu0 0
    %156 = vmatpush1.bf16.msra.mxu0 0
    %157 = vmatprep.subr.bf16.mxu0 0
    %158 = vmatpush1.bf16.msra.mxu0 0
    %159 = vmatprep.subr.bf16.mxu0 0
    %160 = vmatpush1.bf16.msra.mxu0 0
    %161 = vmatprep.subr.bf16.mxu0 0
    %162 = vmatpush1.bf16.msra.mxu0 0
    %163 = vmatprep.subr.bf16.mxu0 0
    %164 = vmatpush1.bf16.msra.mxu0 0
    %165 = vmatprep.subr.bf16.mxu0 0
    %166 = vmatpush1.bf16.msra.mxu0 0
    %167 = vmatprep.subr.bf16.mxu0 0
    %168 = vmatpush1.bf16.msra.mxu0 0
    %169 = vmatprep.subr.bf16.mxu0 0
    %170 = vmatpush1.bf16.msra.mxu0 0
    %171 = vmatprep.subr.bf16.mxu0 0
    %172 = vmatpush1.bf16.msra.mxu0 0
    %173 = vmatprep.subr.bf16.mxu0 0
    %174 = vmatpush1.bf16.msra.mxu0 0
    %175 = vmatprep.subr.bf16.mxu0 0
    %176 = vmatpush1.bf16.msra.mxu0 0
    %177 = vmatprep.subr.bf16.mxu0 0
    %178 = vmatpush1.bf16.msra.mxu0 0
    %179 = vmatprep.subr.bf16.mxu0 0
    %180 = vmatpush1.bf16.msra.mxu0 0
    %181 = vmatprep.subr.bf16.mxu0 0
    %182 = vmatpush1.bf16.msra.mxu0 0
    %183 = vmatprep.mubr.bf16.mxu0 0
    %184 = vmatmul.mubr.bf16.gmra.mrb[0].mxu0 %v149
    %v185 = vpop.f32.mrb[0].mxu0
    %v186 = vadd.f32 0.0, %v185
    %v187 = vpop.f32.mrb[0].mxu0
    %v188 = vadd.f32 0.0, %v187
    %v189 = vpop.f32.mrb[0].mxu0
    %v190 = vpop.f32.mrb[0].mxu0
    %191 = vdwg.mxu0
    %v192 = vld [vmem:[%s3] sm:$0x1]
    %v194 = vlaneseq
    %v195 = vshrl.u32 %v194, 7
    %v196 = vsub.s32 0, %v195
    %v197 = vrot.slane %v192, %v196
    %v199 = vadd.f32 %v188, %v197
    %v201 = vrot.slane %v186, 6
    %v203 = vadd.f32 %v88, %v201
    %v204 = vxor.u32 %v203, 2147483648
    %v205 = vmul.f32 %v204, 1.442695
    %v206 = vpow.pop %v205
    %v207 = vadd.f32 %v206, 1.0
    %v208 = vrcp.pop %v207
    %v209 = vmul.f32 1.0, %v208
    %v210 = vtanh.pop %v203
    %v212 = vrot.slane %v116, 6
    %v214 = vmul.f32 %v209, %v212
    %216 = vrot.lane.b32.xlu0 %v210, 64
    %v217 = vpop.permute.xlu0 %216
    %v219 = vmul.f32 %v209, %v217
    %221 = vrot.lane.b32.xlu0 %v219, 32
    %v222 = vpop.permute.xlu0 %221
    %v224 = vadd.f32 %v214, %v222
    %v225 = vtanh.pop %v224
    %227 = vrot.lane.b32.xlu0 %v225, 64
    %v228 = vpop.permute.xlu0 %227
    %v230 = vmul.f32 %v209, %v228
    %v231 = vpack.c.bf16 %v230, %v230
    %v233 = vrot.slane %v231, 1
    %234 = vrot.lane.b32.xlu0 %v233, 32
    %v235 = vpop.permute.xlu0 %234
    %v237 = vsel %vm147, %v235, 0
    %239 = vmatprep.subr.bf16.mxu0 %v140
    %240 = vmatpush1.bf16.msra.mxu0 %v139
    %241 = vmatprep.subr.bf16.mxu0 %v142
    %242 = vmatpush1.bf16.msra.mxu0 %v141
    %243 = vmatprep.subr.bf16.mxu0 0
    %244 = vmatpush1.bf16.msra.mxu0 0
    %245 = vmatprep.subr.bf16.mxu0 0
    %246 = vmatpush1.bf16.msra.mxu0 0
    %247 = vmatprep.subr.bf16.mxu0 0
    %248 = vmatpush1.bf16.msra.mxu0 0
    %249 = vmatprep.subr.bf16.mxu0 0
    %250 = vmatpush1.bf16.msra.mxu0 0
    %251 = vmatprep.subr.bf16.mxu0 0
    %252 = vmatpush1.bf16.msra.mxu0 0
    %253 = vmatprep.subr.bf16.mxu0 0
    %254 = vmatpush1.bf16.msra.mxu0 0
    %255 = vmatprep.subr.bf16.mxu0 0
    %256 = vmatpush1.bf16.msra.mxu0 0
    %257 = vmatprep.subr.bf16.mxu0 0
    %258 = vmatpush1.bf16.msra.mxu0 0
    %259 = vmatprep.subr.bf16.mxu0 0
    %260 = vmatpush1.bf16.msra.mxu0 0
    %261 = vmatprep.subr.bf16.mxu0 0
    %262 = vmatpush1.bf16.msra.mxu0 0
    %263 = vmatprep.subr.bf16.mxu0 0
    %264 = vmatpush1.bf16.msra.mxu0 0
    %265 = vmatprep.subr.bf16.mxu0 0
    %266 = vmatpush1.bf16.msra.mxu0 0
    %267 = vmatprep.subr.bf16.mxu0 0
    %268 = vmatpush1.bf16.msra.mxu0 0
    %269 = vmatprep.subr.bf16.mxu0 0
    %270 = vmatpush1.bf16.msra.mxu0 0
    %271 = vmatprep.mubr.bf16.mxu0 0
    %272 = vmatmul.mubr.bf16.gmra.mrb[0].mxu0 %v237
    %v273 = vpop.f32.mrb[0].mxu0
    %v274 = vadd.f32 0.0, %v273
    %v275 = vpop.f32.mrb[0].mxu0
    %v276 = vadd.f32 0.0, %v275
    %v277 = vpop.f32.mrb[0].mxu0
    %v278 = vpop.f32.mrb[0].mxu0
    %279 = vdwg.mxu0
    %v280 = vadd.f32 %v276, %v197
    %v282 = vrot.slane %v274, 4
    %v284 = vadd.f32 %v88, %v282
    %v285 = vxor.u32 %v284, 2147483648
    %v286 = vmul.f32 %v285, 1.442695
    %v287 = vpow.pop %v286
    %v288 = vadd.f32 %v287, 1.0
    %v289 = vrcp.pop %v288
    %v290 = vmul.f32 1.0, %v289
    %v291 = vtanh.pop %v284
    %v293 = vrot.slane %v224, 6
    %v295 = vmul.f32 %v290, %v293
    %297 = vrot.lane.b32.xlu0 %v291, 64
    %v298 = vpop.permute.xlu0 %297
    %v300 = vmul.f32 %v290, %v298
    %302 = vrot.lane.b32.xlu0 %v300, 32
    %v303 = vpop.permute.xlu0 %302
    %v305 = vadd.f32 %v295, %v303
    %v306 = vtanh.pop %v305
    %308 = vrot.lane.b32.xlu0 %v306, 64
    %v309 = vpop.permute.xlu0 %308
    %v311 = vmul.f32 %v290, %v309
    %v312 = vpack.c.bf16 %v311, %v311
    %v314 = vrot.slane %v312, 2
    %315 = vrot.lane.b32.xlu0 %v314, 32
    %v316 = vpop.permute.xlu0 %315
    %v318 = vsel %vm147, %v316, 0
    %320 = vmatprep.subr.bf16.mxu0 %v140
    %321 = vmatpush1.bf16.msra.mxu0 %v139
    %322 = vmatprep.subr.bf16.mxu0 %v142
    %323 = vmatpush1.bf16.msra.mxu0 %v141
    %324 = vmatprep.subr.bf16.mxu0 0
    %325 = vmatpush1.bf16.msra.mxu0 0
    %326 = vmatprep.subr.bf16.mxu0 0
    %327 = vmatpush1.bf16.msra.mxu0 0
    %328 = vmatprep.subr.bf16.mxu0 0
    %329 = vmatpush1.bf16.msra.mxu0 0
    %330 = vmatprep.subr.bf16.mxu0 0
    %331 = vmatpush1.bf16.msra.mxu0 0
    %332 = vmatprep.subr.bf16.mxu0 0
    %333 = vmatpush1.bf16.msra.mxu0 0
    %334 = vmatprep.subr.bf16.mxu0 0
    %335 = vmatpush1.bf16.msra.mxu0 0
    %336 = vmatprep.subr.bf16.mxu0 0
    %337 = vmatpush1.bf16.msra.mxu0 0
    %338 = vmatprep.subr.bf16.mxu0 0
    %339 = vmatpush1.bf16.msra.mxu0 0
    %340 = vmatprep.subr.bf16.mxu0 0
    %341 = vmatpush1.bf16.msra.mxu0 0
    %342 = vmatprep.subr.bf16.mxu0 0
    %343 = vmatpush1.bf16.msra.mxu0 0
    %344 = vmatprep.subr.bf16.mxu0 0
    %345 = vmatpush1.bf16.msra.mxu0 0
    %346 = vmatprep.subr.bf16.mxu0 0
    %347 = vmatpush1.bf16.msra.mxu0 0
    %348 = vmatprep.subr.bf16.mxu0 0
    %349 = vmatpush1.bf16.msra.mxu0 0
    %350 = vmatprep.subr.bf16.mxu0 0
    %351 = vmatpush1.bf16.msra.mxu0 0
    %352 = vmatprep.mubr.bf16.mxu0 0
    %353 = vmatmul.mubr.bf16.gmra.mrb[0].mxu0 %v318
    %v354 = vpop.f32.mrb[0].mxu0
    %v355 = vadd.f32 0.0, %v354
    %v356 = vpop.f32.mrb[0].mxu0
    %v357 = vadd.f32 0.0, %v356
    %v358 = vpop.f32.mrb[0].mxu0
    %v359 = vpop.f32.mrb[0].mxu0
    %360 = vdwg.mxu0
    %v361 = vadd.f32 %v357, %v197
    %v363 = vrot.slane %v355, 2
    %v365 = vadd.f32 %v88, %v363
    %v366 = vxor.u32 %v365, 2147483648
    %v367 = vmul.f32 %v366, 1.442695
    %v368 = vpow.pop %v367
    %v369 = vadd.f32 %v368, 1.0
    %v370 = vrcp.pop %v369
    %v371 = vmul.f32 1.0, %v370
    %v372 = vtanh.pop %v365
    %v374 = vrot.slane %v305, 6
    %v376 = vmul.f32 %v371, %v374
    %378 = vrot.lane.b32.xlu0 %v372, 64
    %v379 = vpop.permute.xlu0 %378
    %v381 = vmul.f32 %v371, %v379
    %383 = vrot.lane.b32.xlu0 %v381, 32
    %v384 = vpop.permute.xlu0 %383
    %v386 = vadd.f32 %v376, %v384
    %v387 = vtanh.pop %v386
    %389 = vrot.lane.b32.xlu0 %v387, 64
    %v390 = vpop.permute.xlu0 %389
    %v392 = vmul.f32 %v371, %v390
    %v393 = vpack.c.bf16 %v392, %v392
    %v395 = vrot.slane %v393, 3
    %396 = vrot.lane.b32.xlu0 %v395, 32
    %v397 = vpop.permute.xlu0 %396
    %v399 = vsel %vm147, %v397, 0
    %401 = vmatprep.subr.bf16.mxu0 %v140
    %402 = vmatpush1.bf16.msra.mxu0 %v139
    %403 = vmatprep.subr.bf16.mxu0 %v142
    %404 = vmatpush1.bf16.msra.mxu0 %v141
    %405 = vmatprep.subr.bf16.mxu0 0
    %406 = vmatpush1.bf16.msra.mxu0 0
    %407 = vmatprep.subr.bf16.mxu0 0
    %408 = vmatpush1.bf16.msra.mxu0 0
    %409 = vmatprep.subr.bf16.mxu0 0
    %410 = vmatpush1.bf16.msra.mxu0 0
    %411 = vmatprep.subr.bf16.mxu0 0
    %412 = vmatpush1.bf16.msra.mxu0 0
    %413 = vmatprep.subr.bf16.mxu0 0
    %414 = vmatpush1.bf16.msra.mxu0 0
    %415 = vmatprep.subr.bf16.mxu0 0
    %416 = vmatpush1.bf16.msra.mxu0 0
    %417 = vmatprep.subr.bf16.mxu0 0
    %418 = vmatpush1.bf16.msra.mxu0 0
    %419 = vmatprep.subr.bf16.mxu0 0
    %420 = vmatpush1.bf16.msra.mxu0 0
    %421 = vmatprep.subr.bf16.mxu0 0
    %422 = vmatpush1.bf16.msra.mxu0 0
    %423 = vmatprep.subr.bf16.mxu0 0
    %424 = vmatpush1.bf16.msra.mxu0 0
    %425 = vmatprep.subr.bf16.mxu0 0
    %426 = vmatpush1.bf16.msra.mxu0 0
    %427 = vmatprep.subr.bf16.mxu0 0
    %428 = vmatpush1.bf16.msra.mxu0 0
    %429 = vmatprep.subr.bf16.mxu0 0
    %430 = vmatpush1.bf16.msra.mxu0 0
    %431 = vmatprep.subr.bf16.mxu0 0
    %432 = vmatpush1.bf16.msra.mxu0 0
    %433 = vmatprep.mubr.bf16.mxu0 0
    %434 = vmatmul.mubr.bf16.gmra.mrb[0].mxu0 %v399
    %v435 = vpop.f32.mrb[0].mxu0
    %v436 = vadd.f32 0.0, %v435
    %v437 = vpop.f32.mrb[0].mxu0
    %v438 = vadd.f32 0.0, %v437
    %v439 = vpop.f32.mrb[0].mxu0
    %v440 = vpop.f32.mrb[0].mxu0
    %441 = vdwg.mxu0
    %v442 = vadd.f32 %v438, %v197
    %v443 = vadd.f32 %v91, %v436
    %v444 = vxor.u32 %v443, 2147483648
    %v445 = vmul.f32 %v444, 1.442695
    %v446 = vpow.pop %v445
    %v447 = vadd.f32 %v446, 1.0
    %v448 = vrcp.pop %v447
    %v449 = vmul.f32 1.0, %v448
    %v450 = vtanh.pop %v443
    %v452 = vrot.slane %v386, 6
    %v454 = vmul.f32 %v449, %v452
    %456 = vrot.lane.b32.xlu0 %v450, 64
    %v457 = vpop.permute.xlu0 %456
    %v459 = vmul.f32 %v449, %v457
    %461 = vrot.lane.b32.xlu0 %v459, 32
    %v462 = vpop.permute.xlu0 %461
    %v464 = vadd.f32 %v454, %v462
    %v465 = vtanh.pop %v464
    %467 = vrot.lane.b32.xlu0 %v465, 64
    %v468 = vpop.permute.xlu0 %467
    %v470 = vmul.f32 %v449, %v468
    %v471 = vpack.c.bf16 %v470, %v470
    %473 = vrot.lane.b32.xlu0 %v471, 32
    %v474 = vpop.permute.xlu0 %473
    %v476 = vsel %vm147, %v474, 0
    %478 = vmatprep.subr.bf16.mxu0 %v140
    %479 = vmatpush1.bf16.msra.mxu0 %v139
    %480 = vmatprep.subr.bf16.mxu0 %v142
    %481 = vmatpush1.bf16.msra.mxu0 %v141
    %482 = vmatprep.subr.bf16.mxu0 0
    %483 = vmatpush1.bf16.msra.mxu0 0
    %484 = vmatprep.subr.bf16.mxu0 0
    %485 = vmatpush1.bf16.msra.mxu0 0
    %486 = vmatprep.subr.bf16.mxu0 0
    %487 = vmatpush1.bf16.msra.mxu0 0
    %488 = vmatprep.subr.bf16.mxu0 0
    %489 = vmatpush1.bf16.msra.mxu0 0
    %490 = vmatprep.subr.bf16.mxu0 0
    %491 = vmatpush1.bf16.msra.mxu0 0
    %492 = vmatprep.subr.bf16.mxu0 0
    %493 = vmatpush1.bf16.msra.mxu0 0
    %494 = vmatprep.subr.bf16.mxu0 0
    %495 = vmatpush1.bf16.msra.mxu0 0
    %496 = vmatprep.subr.bf16.mxu0 0
    %497 = vmatpush1.bf16.msra.mxu0 0
    %498 = vmatprep.subr.bf16.mxu0 0
    %499 = vmatpush1.bf16.msra.mxu0 0
    %500 = vmatprep.subr.bf16.mxu0 0
    %501 = vmatpush1.bf16.msra.mxu0 0
    %502 = vmatprep.subr.bf16.mxu0 0
    %503 = vmatpush1.bf16.msra.mxu0 0
    %504 = vmatprep.subr.bf16.mxu0 0
    %505 = vmatpush1.bf16.msra.mxu0 0
    %506 = vmatprep.subr.bf16.mxu0 0
    %507 = vmatpush1.bf16.msra.mxu0 0
    %508 = vmatprep.subr.bf16.mxu0 0
    %509 = vmatpush1.bf16.msra.mxu0 0
    %510 = vmatprep.mubr.bf16.mxu0 0
    %511 = vmatmul.mubr.bf16.gmra.mrb[0].mxu0 %v476
    %v512 = vpop.f32.mrb[0].mxu0
    %v513 = vadd.f32 0.0, %v512
    %v514 = vpop.f32.mrb[0].mxu0
    %v515 = vadd.f32 0.0, %v514
    %v516 = vpop.f32.mrb[0].mxu0
    %v517 = vpop.f32.mrb[0].mxu0
    %518 = vdwg.mxu0
    %v519 = vadd.f32 %v515, %v197
    %v521 = vrot.slane %v513, 6
    %v523 = vadd.f32 %v91, %v521
    %v524 = vxor.u32 %v523, 2147483648
    %v525 = vmul.f32 %v524, 1.442695
    %v526 = vpow.pop %v525
    %v527 = vadd.f32 %v526, 1.0
    %v528 = vrcp.pop %v527
    %v529 = vmul.f32 1.0, %v528
    %v530 = vtanh.pop %v523
    %v532 = vrot.slane %v464, 6
    %v534 = vmul.f32 %v529, %v532
    %536 = vrot.lane.b32.xlu0 %v530, 64
    %v537 = vpop.permute.xlu0 %536
    %v539 = vmul.f32 %v529, %v537
    %541 = vrot.lane.b32.xlu0 %v539, 32
    %v542 = vpop.permute.xlu0 %541
    %v544 = vadd.f32 %v534, %v542
    %v545 = vtanh.pop %v544
    %547 = vrot.lane.b32.xlu0 %v545, 64
    %v548 = vpop.permute.xlu0 %547
    %v550 = vmul.f32 %v529, %v548
    %v551 = vpack.c.bf16 %v550, %v550
    %v553 = vrot.slane %v551, 1
    %554 = vrot.lane.b32.xlu0 %v553, 32
    %v555 = vpop.permute.xlu0 %554
    %v557 = vsel %vm147, %v555, 0
    %559 = vmatprep.subr.bf16.mxu0 %v140
    %560 = vmatpush1.bf16.msra.mxu0 %v139
    %561 = vmatprep.subr.bf16.mxu0 %v142
    %562 = vmatpush1.bf16.msra.mxu0 %v141
    %563 = vmatprep.subr.bf16.mxu0 0
    %564 = vmatpush1.bf16.msra.mxu0 0
    %565 = vmatprep.subr.bf16.mxu0 0
    %566 = vmatpush1.bf16.msra.mxu0 0
    %567 = vmatprep.subr.bf16.mxu0 0
    %568 = vmatpush1.bf16.msra.mxu0 0
    %569 = vmatprep.subr.bf16.mxu0 0
    %570 = vmatpush1.bf16.msra.mxu0 0
    %571 = vmatprep.subr.bf16.mxu0 0
    %572 = vmatpush1.bf16.msra.mxu0 0
    %573 = vmatprep.subr.bf16.mxu0 0
    %574 = vmatpush1.bf16.msra.mxu0 0
    %575 = vmatprep.subr.bf16.mxu0 0
    %576 = vmatpush1.bf16.msra.mxu0 0
    %577 = vmatprep.subr.bf16.mxu0 0
    %578 = vmatpush1.bf16.msra.mxu0 0
    %579 = vmatprep.subr.bf16.mxu0 0
    %580 = vmatpush1.bf16.msra.mxu0 0
    %581 = vmatprep.subr.bf16.mxu0 0
    %582 = vmatpush1.bf16.msra.mxu0 0
    %583 = vmatprep.subr.bf16.mxu0 0
    %584 = vmatpush1.bf16.msra.mxu0 0
    %585 = vmatprep.subr.bf16.mxu0 0
    %586 = vmatpush1.bf16.msra.mxu0 0
    %587 = vmatprep.subr.bf16.mxu0 0
    %588 = vmatpush1.bf16.msra.mxu0 0
    %589 = vmatprep.subr.bf16.mxu0 0
    %590 = vmatpush1.bf16.msra.mxu0 0
    %591 = vmatprep.mubr.bf16.mxu0 0
    %592 = vmatmul.mubr.bf16.gmra.mrb[0].mxu0 %v557
    %v593 = vpop.f32.mrb[0].mxu0
    %v594 = vadd.f32 0.0, %v593
    %v595 = vpop.f32.mrb[0].mxu0
    %v596 = vadd.f32 0.0, %v595
    %v597 = vpop.f32.mrb[0].mxu0
    %v598 = vpop.f32.mrb[0].mxu0
    %599 = vdwg.mxu0
    %v600 = vadd.f32 %v596, %v197
    %v602 = vrot.slane %v594, 4
    %v604 = vadd.f32 %v91, %v602
    %v605 = vxor.u32 %v604, 2147483648
    %v606 = vmul.f32 %v605, 1.442695
    %v607 = vpow.pop %v606
    %v608 = vadd.f32 %v607, 1.0
    %v609 = vrcp.pop %v608
    %v610 = vmul.f32 1.0, %v609
    %v611 = vtanh.pop %v604
    %v613 = vrot.slane %v544, 6
    %v615 = vmul.f32 %v610, %v613
    %617 = vrot.lane.b32.xlu0 %v611, 64
    %v618 = vpop.permute.xlu0 %617
    %v620 = vmul.f32 %v610, %v618
    %622 = vrot.lane.b32.xlu0 %v620, 32
    %v623 = vpop.permute.xlu0 %622
    %v625 = vadd.f32 %v615, %v623
    %v626 = vtanh.pop %v625
    %628 = vrot.lane.b32.xlu0 %v626, 64
    %v629 = vpop.permute.xlu0 %628
    %v631 = vmul.f32 %v610, %v629
    %v632 = vpack.c.bf16 %v631, %v631
    %v634 = vrot.slane %v632, 2
    %635 = vrot.lane.b32.xlu0 %v634, 32
    %v636 = vpop.permute.xlu0 %635
    %v638 = vsel %vm147, %v636, 0
    %640 = vmatprep.subr.bf16.mxu0 %v140
    %641 = vmatpush1.bf16.msra.mxu0 %v139
    %642 = vmatprep.subr.bf16.mxu0 %v142
    %643 = vmatpush1.bf16.msra.mxu0 %v141
    %644 = vmatprep.subr.bf16.mxu0 0
    %645 = vmatpush1.bf16.msra.mxu0 0
    %646 = vmatprep.subr.bf16.mxu0 0
    %647 = vmatpush1.bf16.msra.mxu0 0
    %648 = vmatprep.subr.bf16.mxu0 0
    %649 = vmatpush1.bf16.msra.mxu0 0
    %650 = vmatprep.subr.bf16.mxu0 0
    %651 = vmatpush1.bf16.msra.mxu0 0
    %652 = vmatprep.subr.bf16.mxu0 0
    %653 = vmatpush1.bf16.msra.mxu0 0
    %654 = vmatprep.subr.bf16.mxu0 0
    %655 = vmatpush1.bf16.msra.mxu0 0
    %656 = vmatprep.subr.bf16.mxu0 0
    %657 = vmatpush1.bf16.msra.mxu0 0
    %658 = vmatprep.subr.bf16.mxu0 0
    %659 = vmatpush1.bf16.msra.mxu0 0
    %660 = vmatprep.subr.bf16.mxu0 0
    %661 = vmatpush1.bf16.msra.mxu0 0
    %662 = vmatprep.subr.bf16.mxu0 0
    %663 = vmatpush1.bf16.msra.mxu0 0
    %664 = vmatprep.subr.bf16.mxu0 0
    %665 = vmatpush1.bf16.msra.mxu0 0
    %666 = vmatprep.subr.bf16.mxu0 0
    %667 = vmatpush1.bf16.msra.mxu0 0
    %668 = vmatprep.subr.bf16.mxu0 0
    %669 = vmatpush1.bf16.msra.mxu0 0
    %670 = vmatprep.subr.bf16.mxu0 0
    %671 = vmatpush1.bf16.msra.mxu0 0
    %672 = vmatprep.mubr.bf16.mxu0 0
    %673 = vmatmul.mubr.bf16.gmra.mrb[0].mxu0 %v638
    %v674 = vpop.f32.mrb[0].mxu0
    %v675 = vadd.f32 0.0, %v674
    %v676 = vpop.f32.mrb[0].mxu0
    %v677 = vadd.f32 0.0, %v676
    %v678 = vpop.f32.mrb[0].mxu0
    %v679 = vpop.f32.mrb[0].mxu0
    %680 = vdwg.mxu0
    %v681 = vadd.f32 %v677, %v197
    %v683 = vrot.slane %v675, 2
    %v685 = vadd.f32 %v91, %v683
    %v686 = vxor.u32 %v685, 2147483648
    %v687 = vmul.f32 %v686, 1.442695
    %v688 = vpow.pop %v687
    %v689 = vadd.f32 %v688, 1.0
    %v690 = vrcp.pop %v689
    %v691 = vmul.f32 1.0, %v690
    %v692 = vtanh.pop %v685
    %v694 = vrot.slane %v625, 6
    %v696 = vmul.f32 %v691, %v694
    %698 = vrot.lane.b32.xlu0 %v692, 64
    %v699 = vpop.permute.xlu0 %698
    %v701 = vmul.f32 %v691, %v699
    %703 = vrot.lane.b32.xlu0 %v701, 32
    %v704 = vpop.permute.xlu0 %703
    %v706 = vadd.f32 %v696, %v704
    %v707 = vtanh.pop %v706
    %709 = vrot.lane.b32.xlu0 %v707, 64
    %v710 = vpop.permute.xlu0 %709
    %v712 = vmul.f32 %v691, %v710
    %v713 = vpack.c.bf16 %v712, %v712
    %v715 = vrot.slane %v713, 3
    %716 = vrot.lane.b32.xlu0 %v715, 32
    %v717 = vpop.permute.xlu0 %716
    %v719 = vsel %vm147, %v717, 0
    %721 = vmatprep.subr.bf16.mxu0 %v140
    %722 = vmatpush1.bf16.msra.mxu0 %v139
    %723 = vmatprep.subr.bf16.mxu0 %v142
    %724 = vmatpush1.bf16.msra.mxu0 %v141
    %725 = vmatprep.subr.bf16.mxu0 0
    %726 = vmatpush1.bf16.msra.mxu0 0
    %727 = vmatprep.subr.bf16.mxu0 0
    %728 = vmatpush1.bf16.msra.mxu0 0
    %729 = vmatprep.subr.bf16.mxu0 0
    %730 = vmatpush1.bf16.msra.mxu0 0
    %731 = vmatprep.subr.bf16.mxu0 0
    %732 = vmatpush1.bf16.msra.mxu0 0
    %733 = vmatprep.subr.bf16.mxu0 0
    %734 = vmatpush1.bf16.msra.mxu0 0
    %735 = vmatprep.subr.bf16.mxu0 0
    %736 = vmatpush1.bf16.msra.mxu0 0
    %737 = vmatprep.subr.bf16.mxu0 0
    %738 = vmatpush1.bf16.msra.mxu0 0
    %739 = vmatprep.subr.bf16.mxu0 0
    %740 = vmatpush1.bf16.msra.mxu0 0
    %741 = vmatprep.subr.bf16.mxu0 0
    %742 = vmatpush1.bf16.msra.mxu0 0
    %743 = vmatprep.subr.bf16.mxu0 0
    %744 = vmatpush1.bf16.msra.mxu0 0
    %745 = vmatprep.subr.bf16.mxu0 0
    %746 = vmatpush1.bf16.msra.mxu0 0
    %747 = vmatprep.subr.bf16.mxu0 0
    %748 = vmatpush1.bf16.msra.mxu0 0
    %749 = vmatprep.subr.bf16.mxu0 0
    %750 = vmatpush1.bf16.msra.mxu0 0
    %751 = vmatprep.subr.bf16.mxu0 0
    %752 = vmatpush1.bf16.msra.mxu0 0
    %753 = vmatprep.mubr.bf16.mxu0 0
    %754 = vmatmul.mubr.bf16.gmra.mrb[0].mxu0 %v719
    %v755 = vpop.f32.mrb[0].mxu0
    %v756 = vpop.f32.mrb[0].mxu0
    %v757 = vadd.f32 0.0, %v756
    %v758 = vpop.f32.mrb[0].mxu0
    %v759 = vpop.f32.mrb[0].mxu0
    %760 = vdwg.mxu0
    %v761 = vadd.f32 %v757, %v197
    %v762 = vld [vmem:[%s5] sm:$0xf]
    %v763 = vld [vmem:[%s5 + $0x4] sm:$0xf]
    %v764 = vld [vmem:[%s5 + $0x8] sm:$0xf]
    %v765 = vld [vmem:[%s5 + $0xc] sm:$0xf]
    %v766 = vadd.f32 %v199, 0.0
    %v767 = vxor.u32 %v766, 2147483648
    %v768 = vmul.f32 %v767, 1.442695
    %v769 = vpow.pop %v768
    %v770 = vadd.f32 %v769, 1.0
    %v771 = vrcp.pop %v770
    %v772 = vmul.f32 1.0, %v771
    %v773 = vtanh.pop %v766
    %v774 = vmul.f32 %v772, 0.0
    %776 = vrot.lane.b32.xlu0 %v773, 64
    %v777 = vpop.permute.xlu0 %776
    %v779 = vmul.f32 %v772, %v777
    %781 = vrot.lane.b32.xlu0 %v779, 32
    %v782 = vpop.permute.xlu0 %781
    %v784 = vadd.f32 %v774, %v782
    %v785 = vtanh.pop %v784
    %787 = vrot.lane.b32.xlu0 %v785, 64
    %v788 = vpop.permute.xlu0 %787
    %v790 = vmul.f32 %v772, %v788
    %v791 = vpack.c.bf16 %v790, %v790
    %793 = vrot.lane.b32.xlu0 %v791, 32
    %v794 = vpop.permute.xlu0 %793
    %v799 = vunpack.c.l.b16 %v762
    %v800 = vunpack.c.l.b16 %v763
    %v801 = vunpack.c.l.b16 %v764
    %v802 = vunpack.c.l.b16 %v765
    %v803 = vpack.c.b16 %v800, %v799
    %v804 = vpack.c.b16 %v802, %v801
    %v808 = vsel %vm147, %v794, 0
    %810 = vmatprep.subr.bf16.mxu0 0
    %811 = vmatpush1.bf16.msra.mxu0 %v803
    %812 = vmatprep.subr.bf16.mxu0 0
    %813 = vmatpush1.bf16.msra.mxu0 %v804
    %814 = vmatprep.subr.bf16.mxu0 0
    %815 = vmatpush1.bf16.msra.mxu0 0
    %816 = vmatprep.subr.bf16.mxu0 0
    %817 = vmatpush1.bf16.msra.mxu0 0
    %818 = vmatprep.subr.bf16.mxu0 0
    %819 = vmatpush1.bf16.msra.mxu0 0
    %820 = vmatprep.subr.bf16.mxu0 0
    %821 = vmatpush1.bf16.msra.mxu0 0
    %822 = vmatprep.subr.bf16.mxu0 0
    %823 = vmatpush1.bf16.msra.mxu0 0
    %824 = vmatprep.subr.bf16.mxu0 0
    %825 = vmatpush1.bf16.msra.mxu0 0
    %826 = vmatprep.subr.bf16.mxu0 0
    %827 = vmatpush1.bf16.msra.mxu0 0
    %828 = vmatprep.subr.bf16.mxu0 0
    %829 = vmatpush1.bf16.msra.mxu0 0
    %830 = vmatprep.subr.bf16.mxu0 0
    %831 = vmatpush1.bf16.msra.mxu0 0
    %832 = vmatprep.subr.bf16.mxu0 0
    %833 = vmatpush1.bf16.msra.mxu0 0
    %834 = vmatprep.subr.bf16.mxu0 0
    %835 = vmatpush1.bf16.msra.mxu0 0
    %836 = vmatprep.subr.bf16.mxu0 0
    %837 = vmatpush1.bf16.msra.mxu0 0
    %838 = vmatprep.subr.bf16.mxu0 0
    %839 = vmatpush1.bf16.msra.mxu0 0
    %840 = vmatprep.subr.bf16.mxu0 0
    %841 = vmatpush1.bf16.msra.mxu0 0
    %842 = vmatprep.mubr.bf16.mxu0 0
    %843 = vmatmul.mubr.bf16.gmra.mrb[0].mxu0 %v808
    %v844 = vpop.f32.mrb[0].mxu0
    %v845 = vadd.f32 0.0, %v844
    %v846 = vpop.f32.mrb[0].mxu0
    %v847 = vpop.f32.mrb[0].mxu0
    %v848 = vpop.f32.mrb[0].mxu0
    %849 = vdwg.mxu0
    %v850 = vadd.f32 %v280, %v845
    %v851 = vxor.u32 %v850, 2147483648
    %v852 = vmul.f32 %v851, 1.442695
    %v853 = vpow.pop %v852
    %v854 = vadd.f32 %v853, 1.0
    %v855 = vrcp.pop %v854
    %v856 = vmul.f32 1.0, %v855
    %v857 = vtanh.pop %v850
    %v858 = vmul.f32 %v856, %v784
    %860 = vrot.lane.b32.xlu0 %v857, 64
    %v861 = vpop.permute.xlu0 %860
    %v863 = vmul.f32 %v856, %v861
    %865 = vrot.lane.b32.xlu0 %v863, 32
    %v866 = vpop.permute.xlu0 %865
    %v868 = vadd.f32 %v858, %v866
    %v869 = vtanh.pop %v868
    %871 = vrot.lane.b32.xlu0 %v869, 64
    %v872 = vpop.permute.xlu0 %871
    %v874 = vmul.f32 %v856, %v872
    %v875 = vpack.c.bf16 %v874, %v874
    %877 = vrot.lane.b32.xlu0 %v875, 32
    %v878 = vpop.permute.xlu0 %877
    %v880 = vsel %vm147, %v878, 0
    %882 = vmatprep.subr.bf16.mxu0 0
    %883 = vmatpush1.bf16.msra.mxu0 %v803
    %884 = vmatprep.subr.bf16.mxu0 0
    %885 = vmatpush1.bf16.msra.mxu0 %v804
    %886 = vmatprep.subr.bf16.mxu0 0
    %887 = vmatpush1.bf16.msra.mxu0 0
    %888 = vmatprep.subr.bf16.mxu0 0
    %889 = vmatpush1.bf16.msra.mxu0 0
    %890 = vmatprep.subr.bf16.mxu0 0
    %891 = vmatpush1.bf16.msra.mxu0 0
    %892 = vmatprep.subr.bf16.mxu0 0
    %893 = vmatpush1.bf16.msra.mxu0 0
    %894 = vmatprep.subr.bf16.mxu0 0
    %895 = vmatpush1.bf16.msra.mxu0 0
    %896 = vmatprep.subr.bf16.mxu0 0
    %897 = vmatpush1.bf16.msra.mxu0 0
    %898 = vmatprep.subr.bf16.mxu0 0
    %899 = vmatpush1.bf16.msra.mxu0 0
    %900 = vmatprep.subr.bf16.mxu0 0
    %901 = vmatpush1.bf16.msra.mxu0 0
    %902 = vmatprep.subr.bf16.mxu0 0
    %903 = vmatpush1.bf16.msra.mxu0 0
    %904 = vmatprep.subr.bf16.mxu0 0
    %905 = vmatpush1.bf16.msra.mxu0 0
    %906 = vmatprep.subr.bf16.mxu0 0
    %907 = vmatpush1.bf16.msra.mxu0 0
    %908 = vmatprep.subr.bf16.mxu0 0
    %909 = vmatpush1.bf16.msra.mxu0 0
    %910 = vmatprep.subr.bf16.mxu0 0
    %911 = vmatpush1.bf16.msra.mxu0 0
    %912 = vmatprep.subr.bf16.mxu0 0
    %913 = vmatpush1.bf16.msra.mxu0 0
    %914 = vmatprep.mubr.bf16.mxu0 0
    %915 = vmatmul.mubr.bf16.gmra.mrb[0].mxu0 %v880
    %v916 = vpop.f32.mrb[0].mxu0
    %v917 = vadd.f32 0.0, %v916
    %v918 = vpop.f32.mrb[0].mxu0
    %v919 = vpop.f32.mrb[0].mxu0
    %v920 = vpop.f32.mrb[0].mxu0
    %921 = vdwg.mxu0
    %v922 = vadd.f32 %v361, %v917
    %v923 = vxor.u32 %v922, 2147483648
    %v924 = vmul.f32 %v923, 1.442695
    %v925 = vpow.pop %v924
    %v926 = vadd.f32 %v925, 1.0
    %v927 = vrcp.pop %v926
    %v928 = vmul.f32 1.0, %v927
    %v929 = vtanh.pop %v922
    %v930 = vmul.f32 %v928, %v868
    %932 = vrot.lane.b32.xlu0 %v929, 64
    %v933 = vpop.permute.xlu0 %932
    %v935 = vmul.f32 %v928, %v933
    %937 = vrot.lane.b32.xlu0 %v935, 32
    %v938 = vpop.permute.xlu0 %937
    %v940 = vadd.f32 %v930, %v938
    %v941 = vtanh.pop %v940
    %943 = vrot.lane.b32.xlu0 %v941, 64
    %v944 = vpop.permute.xlu0 %943
    %v946 = vmul.f32 %v928, %v944
    %v947 = vpack.c.bf16 %v946, %v946
    %949 = vrot.lane.b32.xlu0 %v947, 32
    %v950 = vpop.permute.xlu0 %949
    %v952 = vsel %vm147, %v950, 0
    %954 = vmatprep.subr.bf16.mxu0 0
    %955 = vmatpush1.bf16.msra.mxu0 %v803
    %956 = vmatprep.subr.bf16.mxu0 0
    %957 = vmatpush1.bf16.msra.mxu0 %v804
    %958 = vmatprep.subr.bf16.mxu0 0
    %959 = vmatpush1.bf16.msra.mxu0 0
    %960 = vmatprep.subr.bf16.mxu0 0
    %961 = vmatpush1.bf16.msra.mxu0 0
    %962 = vmatprep.subr.bf16.mxu0 0
    %963 = vmatpush1.bf16.msra.mxu0 0
    %964 = vmatprep.subr.bf16.mxu0 0
    %965 = vmatpush1.bf16.msra.mxu0 0
    %966 = vmatprep.subr.bf16.mxu0 0
    %967 = vmatpush1.bf16.msra.mxu0 0
    %968 = vmatprep.subr.bf16.mxu0 0
    %969 = vmatpush1.bf16.msra.mxu0 0
    %970 = vmatprep.subr.bf16.mxu0 0
    %971 = vmatpush1.bf16.msra.mxu0 0
    %972 = vmatprep.subr.bf16.mxu0 0
    %973 = vmatpush1.bf16.msra.mxu0 0
    %974 = vmatprep.subr.bf16.mxu0 0
    %975 = vmatpush1.bf16.msra.mxu0 0
    %976 = vmatprep.subr.bf16.mxu0 0
    %977 = vmatpush1.bf16.msra.mxu0 0
    %978 = vmatprep.subr.bf16.mxu0 0
    %979 = vmatpush1.bf16.msra.mxu0 0
    %980 = vmatprep.subr.bf16.mxu0 0
    %981 = vmatpush1.bf16.msra.mxu0 0
    %982 = vmatprep.subr.bf16.mxu0 0
    %983 = vmatpush1.bf16.msra.mxu0 0
    %984 = vmatprep.subr.bf16.mxu0 0
    %985 = vmatpush1.bf16.msra.mxu0 0
    %986 = vmatprep.mubr.bf16.mxu0 0
    %987 = vmatmul.mubr.bf16.gmra.mrb[0].mxu0 %v952
    %v988 = vpop.f32.mrb[0].mxu0
    %v989 = vadd.f32 0.0, %v988
    %v990 = vpop.f32.mrb[0].mxu0
    %v991 = vpop.f32.mrb[0].mxu0
    %v992 = vpop.f32.mrb[0].mxu0
    %993 = vdwg.mxu0
    %v994 = vadd.f32 %v442, %v989
    %v995 = vxor.u32 %v994, 2147483648
    %v996 = vmul.f32 %v995, 1.442695
    %v997 = vpow.pop %v996
    %v998 = vadd.f32 %v997, 1.0
    %v999 = vrcp.pop %v998
    %v1000 = vmul.f32 1.0, %v999
    %v1001 = vtanh.pop %v994
    %v1002 = vmul.f32 %v1000, %v940
    %1004 = vrot.lane.b32.xlu0 %v1001, 64
    %v1005 = vpop.permute.xlu0 %1004
    %v1007 = vmul.f32 %v1000, %v1005
    %1009 = vrot.lane.b32.xlu0 %v1007, 32
    %v1010 = vpop.permute.xlu0 %1009
    %v1012 = vadd.f32 %v1002, %v1010
    %v1013 = vtanh.pop %v1012
    %1015 = vrot.lane.b32.xlu0 %v1013, 64
    %v1016 = vpop.permute.xlu0 %1015
    %v1018 = vmul.f32 %v1000, %v1016
    %v1019 = vpack.c.bf16 %v1018, %v1018
    %1021 = vrot.lane.b32.xlu0 %v1019, 32
    %v1022 = vpop.permute.xlu0 %1021
    %v1024 = vsel %vm147, %v1022, 0
    %1026 = vmatprep.subr.bf16.mxu0 0
    %1027 = vmatpush1.bf16.msra.mxu0 %v803
    %1028 = vmatprep.subr.bf16.mxu0 0
    %1029 = vmatpush1.bf16.msra.mxu0 %v804
    %1030 = vmatprep.subr.bf16.mxu0 0
    %1031 = vmatpush1.bf16.msra.mxu0 0
    %1032 = vmatprep.subr.bf16.mxu0 0
    %1033 = vmatpush1.bf16.msra.mxu0 0
    %1034 = vmatprep.subr.bf16.mxu0 0
    %1035 = vmatpush1.bf16.msra.mxu0 0
    %1036 = vmatprep.subr.bf16.mxu0 0
    %1037 = vmatpush1.bf16.msra.mxu0 0
    %1038 = vmatprep.subr.bf16.mxu0 0
    %1039 = vmatpush1.bf16.msra.mxu0 0
    %1040 = vmatprep.subr.bf16.mxu0 0
    %1041 = vmatpush1.bf16.msra.mxu0 0
    %1042 = vmatprep.subr.bf16.mxu0 0
    %1043 = vmatpush1.bf16.msra.mxu0 0
    %1044 = vmatprep.subr.bf16.mxu0 0
    %1045 = vmatpush1.bf16.msra.mxu0 0
    %1046 = vmatprep.subr.bf16.mxu0 0
    %1047 = vmatpush1.bf16.msra.mxu0 0
    %1048 = vmatprep.subr.bf16.mxu0 0
    %1049 = vmatpush1.bf16.msra.mxu0 0
    %1050 = vmatprep.subr.bf16.mxu0 0
    %1051 = vmatpush1.bf16.msra.mxu0 0
    %1052 = vmatprep.subr.bf16.mxu0 0
    %1053 = vmatpush1.bf16.msra.mxu0 0
    %1054 = vmatprep.subr.bf16.mxu0 0
    %1055 = vmatpush1.bf16.msra.mxu0 0
    %1056 = vmatprep.subr.bf16.mxu0 0
    %1057 = vmatpush1.bf16.msra.mxu0 0
    %1058 = vmatprep.mubr.bf16.mxu0 0
    %1059 = vmatmul.mubr.bf16.gmra.mrb[0].mxu0 %v1024
    %v1060 = vpop.f32.mrb[0].mxu0
    %v1061 = vadd.f32 0.0, %v1060
    %v1062 = vpop.f32.mrb[0].mxu0
    %v1063 = vpop.f32.mrb[0].mxu0
    %v1064 = vpop.f32.mrb[0].mxu0
    %1065 = vdwg.mxu0
    %v1066 = vadd.f32 %v519, %v1061
    %v1067 = vxor.u32 %v1066, 2147483648
    %v1068 = vmul.f32 %v1067, 1.442695
    %v1069 = vpow.pop %v1068
    %v1070 = vadd.f32 %v1069, 1.0
    %v1071 = vrcp.pop %v1070
    %v1072 = vmul.f32 1.0, %v1071
    %v1073 = vtanh.pop %v1066
    %v1074 = vmul.f32 %v1072, %v1012
    %1076 = vrot.lane.b32.xlu0 %v1073, 64
    %v1077 = vpop.permute.xlu0 %1076
    %v1079 = vmul.f32 %v1072, %v1077
    %1081 = vrot.lane.b32.xlu0 %v1079, 32
    %v1082 = vpop.permute.xlu0 %1081
    %v1084 = vadd.f32 %v1074, %v1082
    %v1085 = vtanh.pop %v1084
    %1087 = vrot.lane.b32.xlu0 %v1085, 64
    %v1088 = vpop.permute.xlu0 %1087
    %v1090 = vmul.f32 %v1072, %v1088
    %v1091 = vpack.c.bf16 %v1090, %v1090
    %1093 = vrot.lane.b32.xlu0 %v1091, 32
    %v1094 = vpop.permute.xlu0 %1093
    %v1096 = vsel %vm147, %v1094, 0
    %1098 = vmatprep.subr.bf16.mxu0 0
    %1099 = vmatpush1.bf16.msra.mxu0 %v803
    %1100 = vmatprep.subr.bf16.mxu0 0
    %1101 = vmatpush1.bf16.msra.mxu0 %v804
    %1102 = vmatprep.subr.bf16.mxu0 0
    %1103 = vmatpush1.bf16.msra.mxu0 0
    %1104 = vmatprep.subr.bf16.mxu0 0
    %1105 = vmatpush1.bf16.msra.mxu0 0
    %1106 = vmatprep.subr.bf16.mxu0 0
    %1107 = vmatpush1.bf16.msra.mxu0 0
    %1108 = vmatprep.subr.bf16.mxu0 0
    %1109 = vmatpush1.bf16.msra.mxu0 0
    %1110 = vmatprep.subr.bf16.mxu0 0
    %1111 = vmatpush1.bf16.msra.mxu0 0
    %1112 = vmatprep.subr.bf16.mxu0 0
    %1113 = vmatpush1.bf16.msra.mxu0 0
    %1114 = vmatprep.subr.bf16.mxu0 0
    %1115 = vmatpush1.bf16.msra.mxu0 0
    %1116 = vmatprep.subr.bf16.mxu0 0
    %1117 = vmatpush1.bf16.msra.mxu0 0
    %1118 = vmatprep.subr.bf16.mxu0 0
    %1119 = vmatpush1.bf16.msra.mxu0 0
    %1120 = vmatprep.subr.bf16.mxu0 0
    %1121 = vmatpush1.bf16.msra.mxu0 0
    %1122 = vmatprep.subr.bf16.mxu0 0
    %1123 = vmatpush1.bf16.msra.mxu0 0
    %1124 = vmatprep.subr.bf16.mxu0 0
    %1125 = vmatpush1.bf16.msra.mxu0 0
    %1126 = vmatprep.subr.bf16.mxu0 0
    %1127 = vmatpush1.bf16.msra.mxu0 0
    %1128 = vmatprep.subr.bf16.mxu0 0
    %1129 = vmatpush1.bf16.msra.mxu0 0
    %1130 = vmatprep.mubr.bf16.mxu0 0
    %1131 = vmatmul.mubr.bf16.gmra.mrb[0].mxu0 %v1096
    %v1132 = vpop.f32.mrb[0].mxu0
    %v1133 = vadd.f32 0.0, %v1132
    %v1134 = vpop.f32.mrb[0].mxu0
    %v1135 = vpop.f32.mrb[0].mxu0
    %v1136 = vpop.f32.mrb[0].mxu0
    %1137 = vdwg.mxu0
    %v1138 = vadd.f32 %v600, %v1133
    %v1139 = vxor.u32 %v1138, 2147483648
    %v1140 = vmul.f32 %v1139, 1.442695
    %v1141 = vpow.pop %v1140
    %v1142 = vadd.f32 %v1141, 1.0
    %v1143 = vrcp.pop %v1142
    %v1144 = vmul.f32 1.0, %v1143
    %v1145 = vtanh.pop %v1138
    %v1146 = vmul.f32 %v1144, %v1084
    %1148 = vrot.lane.b32.xlu0 %v1145, 64
    %v1149 = vpop.permute.xlu0 %1148
    %v1151 = vmul.f32 %v1144, %v1149
    %1153 = vrot.lane.b32.xlu0 %v1151, 32
    %v1154 = vpop.permute.xlu0 %1153
    %v1156 = vadd.f32 %v1146, %v1154
    %v1157 = vtanh.pop %v1156
    %1159 = vrot.lane.b32.xlu0 %v1157, 64
    %v1160 = vpop.permute.xlu0 %1159
    %v1162 = vmul.f32 %v1144, %v1160
    %v1163 = vpack.c.bf16 %v1162, %v1162
    %1165 = vrot.lane.b32.xlu0 %v1163, 32
    %v1166 = vpop.permute.xlu0 %1165
    %v1168 = vsel %vm147, %v1166, 0
    %1170 = vmatprep.subr.bf16.mxu0 0
    %1171 = vmatpush1.bf16.msra.mxu0 %v803
    %1172 = vmatprep.subr.bf16.mxu0 0
    %1173 = vmatpush1.bf16.msra.mxu0 %v804
    %1174 = vmatprep.subr.bf16.mxu0 0
    %1175 = vmatpush1.bf16.msra.mxu0 0
    %1176 = vmatprep.subr.bf16.mxu0 0
    %1177 = vmatpush1.bf16.msra.mxu0 0
    %1178 = vmatprep.subr.bf16.mxu0 0
    %1179 = vmatpush1.bf16.msra.mxu0 0
    %1180 = vmatprep.subr.bf16.mxu0 0
    %1181 = vmatpush1.bf16.msra.mxu0 0
    %1182 = vmatprep.subr.bf16.mxu0 0
    %1183 = vmatpush1.bf16.msra.mxu0 0
    %1184 = vmatprep.subr.bf16.mxu0 0
    %1185 = vmatpush1.bf16.msra.mxu0 0
    %1186 = vmatprep.subr.bf16.mxu0 0
    %1187 = vmatpush1.bf16.msra.mxu0 0
    %1188 = vmatprep.subr.bf16.mxu0 0
    %1189 = vmatpush1.bf16.msra.mxu0 0
    %1190 = vmatprep.subr.bf16.mxu0 0
    %1191 = vmatpush1.bf16.msra.mxu0 0
    %1192 = vmatprep.subr.bf16.mxu0 0
    %1193 = vmatpush1.bf16.msra.mxu0 0
    %1194 = vmatprep.subr.bf16.mxu0 0
    %1195 = vmatpush1.bf16.msra.mxu0 0
    %1196 = vmatprep.subr.bf16.mxu0 0
    %1197 = vmatpush1.bf16.msra.mxu0 0
    %1198 = vmatprep.subr.bf16.mxu0 0
    %1199 = vmatpush1.bf16.msra.mxu0 0
    %1200 = vmatprep.subr.bf16.mxu0 0
    %1201 = vmatpush1.bf16.msra.mxu0 0
    %1202 = vmatprep.mubr.bf16.mxu0 0
    %1203 = vmatmul.mubr.bf16.gmra.mrb[0].mxu0 %v1168
    %v1204 = vpop.f32.mrb[0].mxu0
    %v1205 = vadd.f32 0.0, %v1204
    %v1206 = vpop.f32.mrb[0].mxu0
    %v1207 = vpop.f32.mrb[0].mxu0
    %v1208 = vpop.f32.mrb[0].mxu0
    %1209 = vdwg.mxu0
    %v1210 = vadd.f32 %v681, %v1205
    %v1211 = vxor.u32 %v1210, 2147483648
    %v1212 = vmul.f32 %v1211, 1.442695
    %v1213 = vpow.pop %v1212
    %v1214 = vadd.f32 %v1213, 1.0
    %v1215 = vrcp.pop %v1214
    %v1216 = vmul.f32 1.0, %v1215
    %v1217 = vtanh.pop %v1210
    %v1218 = vmul.f32 %v1216, %v1156
    %1220 = vrot.lane.b32.xlu0 %v1217, 64
    %v1221 = vpop.permute.xlu0 %1220
    %v1223 = vmul.f32 %v1216, %v1221
    %1225 = vrot.lane.b32.xlu0 %v1223, 32
    %v1226 = vpop.permute.xlu0 %1225
    %v1228 = vadd.f32 %v1218, %v1226
    %v1229 = vtanh.pop %v1228
    %1231 = vrot.lane.b32.xlu0 %v1229, 64
    %v1232 = vpop.permute.xlu0 %1231
    %v1234 = vmul.f32 %v1216, %v1232
    %v1235 = vpack.c.bf16 %v1234, %v1234
    %1237 = vrot.lane.b32.xlu0 %v1235, 32
    %v1238 = vpop.permute.xlu0 %1237
    %v1240 = vsel %vm147, %v1238, 0
    %1242 = vmatprep.subr.bf16.mxu0 0
    %1243 = vmatpush1.bf16.msra.mxu0 %v803
    %1244 = vmatprep.subr.bf16.mxu0 0
    %1245 = vmatpush1.bf16.msra.mxu0 %v804
    %1246 = vmatprep.subr.bf16.mxu0 0
    %1247 = vmatpush1.bf16.msra.mxu0 0
    %1248 = vmatprep.subr.bf16.mxu0 0
    %1249 = vmatpush1.bf16.msra.mxu0 0
    %1250 = vmatprep.subr.bf16.mxu0 0
    %1251 = vmatpush1.bf16.msra.mxu0 0
    %1252 = vmatprep.subr.bf16.mxu0 0
    %1253 = vmatpush1.bf16.msra.mxu0 0
    %1254 = vmatprep.subr.bf16.mxu0 0
    %1255 = vmatpush1.bf16.msra.mxu0 0
    %1256 = vmatprep.subr.bf16.mxu0 0
    %1257 = vmatpush1.bf16.msra.mxu0 0
    %1258 = vmatprep.subr.bf16.mxu0 0
    %1259 = vmatpush1.bf16.msra.mxu0 0
    %1260 = vmatprep.subr.bf16.mxu0 0
    %1261 = vmatpush1.bf16.msra.mxu0 0
    %1262 = vmatprep.subr.bf16.mxu0 0
    %1263 = vmatpush1.bf16.msra.mxu0 0
    %1264 = vmatprep.subr.bf16.mxu0 0
    %1265 = vmatpush1.bf16.msra.mxu0 0
    %1266 = vmatprep.subr.bf16.mxu0 0
    %1267 = vmatpush1.bf16.msra.mxu0 0
    %1268 = vmatprep.subr.bf16.mxu0 0
    %1269 = vmatpush1.bf16.msra.mxu0 0
    %1270 = vmatprep.subr.bf16.mxu0 0
    %1271 = vmatpush1.bf16.msra.mxu0 0
    %1272 = vmatprep.subr.bf16.mxu0 0
    %1273 = vmatpush1.bf16.msra.mxu0 0
    %1274 = vmatprep.mubr.bf16.mxu0 0
    %1275 = vmatmul.mubr.bf16.gmra.mrb[0].mxu0 %v1240
    %v1276 = vpop.f32.mrb[0].mxu0
    %v1277 = vadd.f32 0.0, %v1276
    %v1278 = vpop.f32.mrb[0].mxu0
    %v1279 = vpop.f32.mrb[0].mxu0
    %v1280 = vpop.f32.mrb[0].mxu0
    %1281 = vdwg.mxu0
    %v1282 = vadd.f32 %v761, %v1277
    %v1283 = vxor.u32 %v1282, 2147483648
    %v1284 = vmul.f32 %v1283, 1.442695
    %v1285 = vpow.pop %v1284
    %v1286 = vadd.f32 %v1285, 1.0
    %v1287 = vrcp.pop %v1286
    %v1288 = vmul.f32 1.0, %v1287
    %v1289 = vtanh.pop %v1282
    %v1290 = vmul.f32 %v1288, %v1228
    %1292 = vrot.lane.b32.xlu0 %v1289, 64
    %v1293 = vpop.permute.xlu0 %1292
    %v1295 = vmul.f32 %v1288, %v1293
    %1297 = vrot.lane.b32.xlu0 %v1295, 32
    %v1298 = vpop.permute.xlu0 %1297
    %v1300 = vadd.f32 %v1290, %v1298
    %v1301 = vtanh.pop %v1300
    %1303 = vrot.lane.b32.xlu0 %v1301, 64
    %v1304 = vpop.permute.xlu0 %1303
    %v1306 = vmul.f32 %v1288, %v1304
    %v1307 = vpack.c.bf16 %v1306, %v1306
    %v1308 = vld [vmem:[%s6] sm:$0xf]
    %v1309 = vld [vmem:[%s6 + $0x4] sm:$0xf]
    %v1310 = vld [vmem:[%s6 + $0x8] sm:$0xf]
    %v1311 = vld [vmem:[%s6 + $0xc] sm:$0xf]
    %v1312 = vld [vmem:[%s7] sm:$0x1]
    %v1314 = vlaneseq
    %v1315 = vshrl.u32 %v1314, 7
    %v1316 = vsub.s32 0, %v1315
    %v1317 = vrot.slane %v1312, %v1316
    %1320 = vrot.lane.b32.xlu0 %v1307, 32
    %v1321 = vpop.permute.xlu0 %1320
    %v1326 = vunpack.c.l.b16 %v1308
    %v1327 = vunpack.c.l.b16 %v1309
    %v1328 = vunpack.c.l.b16 %v1310
    %v1329 = vunpack.c.l.b16 %v1311
    %v1330 = vpack.c.b16 %v1327, %v1326
    %v1331 = vpack.c.b16 %v1329, %v1328
    %v1335 = vsel %vm147, %v1321, 0
    %1337 = vmatprep.subr.bf16.mxu0 0
    %1338 = vmatpush1.bf16.msra.mxu0 %v1330
    %1339 = vmatprep.subr.bf16.mxu0 0
    %1340 = vmatpush1.bf16.msra.mxu0 %v1331
    %1341 = vmatprep.subr.bf16.mxu0 0
    %1342 = vmatpush1.bf16.msra.mxu0 0
    %1343 = vmatprep.subr.bf16.mxu0 0
    %1344 = vmatpush1.bf16.msra.mxu0 0
    %1345 = vmatprep.subr.bf16.mxu0 0
    %1346 = vmatpush1.bf16.msra.mxu0 0
    %1347 = vmatprep.subr.bf16.mxu0 0
    %1348 = vmatpush1.bf16.msra.mxu0 0
    %1349 = vmatprep.subr.bf16.mxu0 0
    %1350 = vmatpush1.bf16.msra.mxu0 0
    %1351 = vmatprep.subr.bf16.mxu0 0
    %1352 = vmatpush1.bf16.msra.mxu0 0
    %1353 = vmatprep.subr.bf16.mxu0 0
    %1354 = vmatpush1.bf16.msra.mxu0 0
    %1355 = vmatprep.subr.bf16.mxu0 0
    %1356 = vmatpush1.bf16.msra.mxu0 0
    %1357 = vmatprep.subr.bf16.mxu0 0
    %1358 = vmatpush1.bf16.msra.mxu0 0
    %1359 = vmatprep.subr.bf16.mxu0 0
    %1360 = vmatpush1.bf16.msra.mxu0 0
    %1361 = vmatprep.subr.bf16.mxu0 0
    %1362 = vmatpush1.bf16.msra.mxu0 0
    %1363 = vmatprep.subr.bf16.mxu0 0
    %1364 = vmatpush1.bf16.msra.mxu0 0
    %1365 = vmatprep.subr.bf16.mxu0 0
    %1366 = vmatpush1.bf16.msra.mxu0 0
    %1367 = vmatprep.subr.bf16.mxu0 0
    %1368 = vmatpush1.bf16.msra.mxu0 0
    %1369 = vmatprep.mubr.bf16.mxu0 0
    %1370 = vmatmul.mubr.bf16.gmra.mrb[0].mxu0 %v1335
    %v1371 = vpop.f32.mrb[0].mxu0
    %v1372 = vadd.f32 %v1317, %v1371
    %v1373 = vpop.f32.mrb[0].mxu0
    %v1374 = vpop.f32.mrb[0].mxu0
    %v1375 = vpop.f32.mrb[0].mxu0
    %1376 = vdwg.mxu0
    %vm1377 = vcmask 58368
    %1378 = vst.msk [vmem:[#allocation2] sm:$0x3] %vm1377, %v1372
    // Predicated region
    $region34: #{forward.1} parent=1 // pred_check
      _
    $region35: #{forward.1} parent=1 // pred_check_branch
      %1380 = sbr.rel (0) target = $region37
    $region36: #{forward.1} parent=1 // pred_region
      %s1382 = ssub.s32 32, 32
      %1383 = vsyncadd [#allocation3], %s1382
      %s1385 = sshll.u32 [#allocation2], 4
      %s1386 = int_to_ptr.vmem [resolvable:$true] %s1385
      %1388 = dma.vmem_to_hbm [thread:$0]  %s1386, 32, %s8, [#allocation3]
    $region37: #{forward.1} parent=1 // pred_fallthru
      _
    // Predicated region
    $region38: #{forward.1} parent=1 // pred_check
      _
    $region39: #{forward.1} parent=1 // pred_check_branch
      %1390 = sbr.rel (0) target = $region41
    $region40: #{forward.1} parent=1 // pred_region
      %1391 = dma.done [#allocation3], 32
    $region41: #{forward.1} parent=1 // pred_fallthru
      _
    %1392 = vsyncpa [#allocation3], 1

</llo_original>
